<compile_context>
chip_gen: v5e
topology: v5e:2x2
jax: 0.10.0
libtpu: 0.0.40
codegen_flags: <defaults>
</compile_context>

<pallas_src>
import jax
import jax.numpy as jnp
from jax.experimental import pallas as pl
from jax.experimental.pallas import tpu as pltpu


_VMEM_LIMIT_BYTES = 48 * 1024 * 1024   # <= ~56 MiB keeps v7x (64 MiB VMEM) safe


# ----------------------------------------------------------------------------
# helpers
# ----------------------------------------------------------------------------
def _round_up(v, m):
    return ((v + m - 1) // m) * m


def _resident_spec(shape):
    """Whole-array block with a constant block index (stays resident in VMEM)."""
    nd = len(shape)
    return pl.BlockSpec(shape, lambda i, k, _nd=nd: (0,) * _nd)


def _linear_params(key, fan_in, fan_out):
    """Deterministic nn.Linear-style init. W stored (in, out); bias (1, out)."""
    kw, kb = jax.random.split(key)
    bound = 1.0 / (fan_in ** 0.5)
    w = jax.random.uniform(kw, (fan_in, fan_out), jnp.float32, -bound, bound)
    b = jax.random.uniform(kb, (1, fan_out), jnp.float32, -bound, bound)
    return w, b


def _pad2(a, rows, cols):
    """Zero-pad a 2-D array up to (rows, cols)."""
    return jnp.pad(a, ((0, rows - a.shape[0]), (0, cols - a.shape[1])))


def _flatten_pad(images, dims):
    """NCHW -> (N, in_pad) bf16, zero-padded feature columns."""
    x = images.reshape(images.shape[0], -1)
    if dims["in_pad"] != dims["in_dim"]:
        x = jnp.pad(x, ((0, 0), (0, dims["in_pad"] - dims["in_dim"])))
    return x.astype(jnp.bfloat16)


# ----------------------------------------------------------------------------
# model parameters (padded to lane-dense widths, matmul weights in bf16)
# ----------------------------------------------------------------------------
def build_model(key, in_dim, nf, L, num_classes, proj_hidden, feat_dim):
    # TODO(synk): num_classes > 1 would need a (nf_pad, c_pad) matmul classifier
    # head instead of the VPU row-dot used below.
    assert num_classes == 1

    keys = jax.random.split(key, 7)
    enc_w, enc_b = _linear_params(keys[0], in_dim, nf)
    wv, bv = _linear_params(keys[1], nf, L)
    wu, bu = _linear_params(keys[2], nf, L)
    ww, bw = _linear_params(keys[3], L, 1)
    wc, bc = _linear_params(keys[4], nf, num_classes)
    # note: Linear_Classifier.self.fc exists in __init__ but is unused in forward.
    w1, b1 = _linear_params(keys[5], nf, proj_hidden)
    w2, b2 = _linear_params(keys[6], proj_hidden, feat_dim)

    # K tile for streaming the encoder weight (resident when in_dim is small).
    k_tile = 512 if in_dim > 4096 else _round_up(in_dim, 128)
    in_p = _round_up(in_dim, k_tile)
    nf_p = _round_up(nf, 128)
    L_p = _round_up(L, 128)
    c_p = _round_up(num_classes, 128)
    ph_p = _round_up(proj_hidden, 128)
    fd_p = _round_up(feat_dim, 128)

    bf16 = jnp.bfloat16
    # fused weight: [attention_V | attention_U | projector-1] along output axis
    wcat = jnp.concatenate([_pad2(wv, nf_p, L_p), _pad2(wu, nf_p, L_p),
                            _pad2(w1, nf_p, ph_p)], axis=1).astype(bf16)
    bcat = jnp.concatenate([_pad2(bv, 1, L_p), _pad2(bu, 1, L_p),
                            _pad2(b1, 1, ph_p)], axis=1)

    model = {
        "dims": dict(in_dim=in_dim, nf=nf, L=L, num_classes=num_classes,
                     proj_hidden=proj_hidden, feat_dim=feat_dim,
                     in_pad=in_p, nf_pad=nf_p, L_pad=L_p, c_pad=c_p,
                     ph_pad=ph_p, fd_pad=fd_p, k_tile=k_tile),
        # encoder stand-in
        "enc_w": _pad2(enc_w, in_p, nf_p).astype(bf16),
        "enc_b": _pad2(enc_b, 1, nf_p),
        # fused attention_V / attention_U / projector-1
        "attproj_w": wcat,
        "attproj_b": bcat,
        # attention_W as a row (VPU multiply + lane reduce)
        "att_w_row": _pad2(ww.T, 1, L_p),
        "att_w_b": bw.reshape(1, 1),
        # classifier as a row (VPU multiply + lane reduce), num_classes == 1
        "cls_row": _pad2(wc.T, 1, nf_p),
        "cls_b": bc.reshape(1, 1),
        # projector weights (proj1 kept separate for the pred_on=False path)
        "proj1_w": _pad2(w1, nf_p, ph_p).astype(bf16),
        "proj1_b": _pad2(b1, 1, ph_p),
        "proj2_w": _pad2(w2, ph_p, fd_p).astype(bf16),
        "proj2_b": _pad2(b2, 1, fd_p),
    }
    return model


_FUSED_WEIGHT_KEYS = ("enc_w", "enc_b", "attproj_w", "attproj_b",
                      "att_w_row", "att_w_b", "cls_row", "cls_b",
                      "proj2_w", "proj2_b")
_ENCPROJ_WEIGHT_KEYS = ("enc_w", "enc_b", "proj1_w", "proj1_b",
                        "proj2_w", "proj2_b")


# ----------------------------------------------------------------------------
# fused kernel: grid = (bag_steps, k_steps).  Each bag step handles B_TILE bags
# (B_TILE*n instance rows); the encoder matmul is K-tiled into a VMEM f32
# accumulator, and the attention / softmax / classifier / projector epilogue
# runs on the last K step with `feat` kept in VMEM throughout.
# ----------------------------------------------------------------------------
def _make_fused_kernel(bt, n, L_pad, c_pad, num_classes):
    rows = bt * n

    def kernel(x_ref, enc_w_ref, enc_b_ref, wcat_ref, bcat_ref,
               ww_ref, wwb_ref, cls_ref, clsb_ref, w2_ref, b2_ref,
               bag_ref, inst_ref, proj_ref, feat_acc):
        k = pl.program_id(1)

        @pl.when(k == 0)
        def _zero():
            feat_acc[...] = jnp.zeros_like(feat_acc)

        # encoder stand-in: K-tiled Linear, f32 accumulation on the MXU
        feat_acc[...] += jnp.dot(x_ref[0], enc_w_ref[...],
                                 preferred_element_type=jnp.float32)

        @pl.when(k == pl.num_programs(1) - 1)
        def _epilogue():
            feat = jnp.maximum(feat_acc[...] + enc_b_ref[...], 0.0)   # (rows, nf_pad)
            feat_bf = feat.astype(jnp.bfloat16)

            # one fused MXU push for attention_V | attention_U | projector-1
            z = (jnp.dot(feat_bf, wcat_ref[...],
                         preferred_element_type=jnp.float32) + bcat_ref[...])
            a_v = jnp.tanh(z[:, :L_pad])
            a_u = jax.nn.sigmoid(z[:, L_pad:2 * L_pad])
            hdn = jnp.maximum(z[:, 2 * L_pad:], 0.0)                  # (rows, ph_pad)

            # attention scores: VPU multiply + lane reduce (no N=1 matmul)
            scores = (jnp.sum((a_v * a_u) * ww_ref[...], axis=-1, keepdims=True)
                      + wwb_ref[...])                                 # (rows, 1)

            # per-bag softmax over instances (column layout, sublane reduces)
            scores3 = scores.reshape(bt, n, 1)
            m = jnp.max(scores3, axis=1, keepdims=True)
            e = jnp.exp(scores3 - m)
            attn = e * pl.reciprocal(jnp.sum(e, axis=1, keepdims=True),
                                     approx=True)                    # (bt, n, 1)

            # weighted_features = A @ h as VPU multiply + sublane reduce
            weighted = jnp.sum(attn * feat.reshape(bt, n, -1), axis=1)  # (bt, nf_pad)

            # classifier head (num_classes == 1): VPU row-dot instead of matmul
            y = (jnp.sum(weighted * cls_ref[...], axis=-1, keepdims=True)
                 + clsb_ref[...])                                     # (bt, 1)
            lane_c = jax.lax.broadcasted_iota(jnp.int32, (bt, c_pad), 1)
            bag_ref[0] = jnp.where(lane_c < num_classes,
                                   jax.nn.sigmoid(y), 0.0)            # lane-dense

            # instance sigmoid scores, lane-dense store (value in lane 0)
            lane_r = jax.lax.broadcasted_iota(jnp.int32, (rows, 128), 1)
            inst_ref[0] = jnp.where(lane_r == 0, jax.nn.sigmoid(scores), 0.0)

            # projector tail: (ReLU already applied) -> Dropout(eval) -> Linear -> L2 norm
            p = (jnp.dot(hdn.astype(jnp.bfloat16), w2_ref[...],
                         preferred_element_type=jnp.float32) + b2_ref[...])
            inv = jax.lax.rsqrt(
                jnp.maximum(jnp.sum(p * p, axis=-1, keepdims=True), 1e-24))
            proj_ref[0] = p * inv

    return kernel


def _pick_bag_tile(num_bags, n):
    """Bags per grid step: target ~256 MXU rows, keep >=2 steps when cheap."""
    bt = max(1, min(num_bags, 256 // max(n, 1)))
    if bt >= num_bags and num_bags > 1:
        half = (num_bags + 1) // 2
        if half * n >= 128:          # only split if M stays MXU-friendly (v7x 2 TCs)
            bt = half
    return bt


def fused_bag_forward(x3, model, bt, n):
    num_steps, rows, in_pad = x3.shape
    d = model["dims"]
    nf_pad, L_pad = d["nf_pad"], d["L_pad"]
    c_pad, fd_pad = d["c_pad"], d["fd_pad"]
    tk = d["k_tile"]
    k_steps = in_pad // tk

    weights = [model[name] for name in _FUSED_WEIGHT_KEYS]
    in_specs = [pl.BlockSpec((1, rows, tk), lambda i, k: (i, 0, k)),
                pl.BlockSpec((tk, nf_pad), lambda i, k: (k, 0))]
    in_specs += [_resident_spec(model[name].shape)
                 for name in _FUSED_WEIGHT_KEYS[1:]]

    out_specs = [pl.BlockSpec((1, bt, c_pad), lambda i, k: (i, 0, 0)),
                 pl.BlockSpec((1, rows, 128), lambda i, k: (i, 0, 0)),
                 pl.BlockSpec((1, rows, fd_pad), lambda i, k: (i, 0, 0))]
    out_shape = [jax.ShapeDtypeStruct((num_steps, bt, c_pad), jnp.float32),
                 jax.ShapeDtypeStruct((num_steps, rows, 128), jnp.float32),
                 jax.ShapeDtypeStruct((num_steps, rows, fd_pad), jnp.float32)]

    return pl.pallas_call(
        _make_fused_kernel(bt, n, L_pad, c_pad, d["num_classes"]),
        grid=(num_steps, k_steps),
        in_specs=in_specs,
        out_specs=out_specs,
        out_shape=out_shape,
        scratch_shapes=[pltpu.VMEM((rows, nf_pad), jnp.float32)],
        compiler_params=pltpu.CompilerParams(
            dimension_semantics=("parallel", "arbitrary"),
            vmem_limit_bytes=_VMEM_LIMIT_BYTES),
    )(x3, *weights)


# ----------------------------------------------------------------------------
# row-tiled encoder + projector kernel (pred_on=False path), K-tiled encoder
# ----------------------------------------------------------------------------
def _enc_proj_kernel(x_ref, enc_w_ref, enc_b_ref, w1_ref, b1_ref,
                     w2_ref, b2_ref, proj_ref, feat_acc):
    k = pl.program_id(1)

    @pl.when(k == 0)
    def _zero():
        feat_acc[...] = jnp.zeros_like(feat_acc)

    feat_acc[...] += jnp.dot(x_ref[...], enc_w_ref[...],
                             preferred_element_type=jnp.float32)

    @pl.when(k == pl.num_programs(1) - 1)
    def _epilogue():
        feat = jnp.maximum(feat_acc[...] + enc_b_ref[...], 0.0)
        hdn = jnp.maximum(
            jnp.dot(feat.astype(jnp.bfloat16), w1_ref[...],
                    preferred_element_type=jnp.float32) + b1_ref[...], 0.0)
        p = (jnp.dot(hdn.astype(jnp.bfloat16), w2_ref[...],
                     preferred_element_type=jnp.float32) + b2_ref[...])
        inv = jax.lax.rsqrt(
            jnp.maximum(jnp.sum(p * p, axis=-1, keepdims=True), 1e-24))
        proj_ref[...] = p * inv


def enc_proj_forward(x_flat, model, tile_m):
    rows, in_pad = x_flat.shape
    d = model["dims"]
    nf_pad, fd_pad, tk = d["nf_pad"], d["fd_pad"], d["k_tile"]
    k_steps = in_pad // tk

    weights = [model[name] for name in _ENCPROJ_WEIGHT_KEYS]
    in_specs = [pl.BlockSpec((tile_m, tk), lambda i, k: (i, k)),
                pl.BlockSpec((tk, nf_pad), lambda i, k: (k, 0))]
    in_specs += [_resident_spec(model[name].shape)
                 for name in _ENCPROJ_WEIGHT_KEYS[1:]]

    return pl.pallas_call(
        _enc_proj_kernel,
        grid=(rows // tile_m, k_steps),
        in_specs=in_specs,
        out_specs=pl.BlockSpec((tile_m, fd_pad), lambda i, k: (i, 0)),
        out_shape=jax.ShapeDtypeStruct((rows, fd_pad), jnp.float32),
        scratch_shapes=[pltpu.VMEM((tile_m, nf_pad), jnp.float32)],
        compiler_params=pltpu.CompilerParams(
            dimension_semantics=("parallel", "arbitrary"),
            vmem_limit_bytes=_VMEM_LIMIT_BYTES),
    )(x_flat, *weights)


# ----------------------------------------------------------------------------
# full Embeddingmodel.forward(input, projector=..., pred_on=...)
# ----------------------------------------------------------------------------
def embeddingmodel_forward(inputs, model, projector=False, pred_on=False):
    d = model["dims"]
    num_classes, feat_dim, fd_pad, c_pad = (d["num_classes"], d["feat_dim"],
                                            d["fd_pad"], d["c_pad"])

    if pred_on:
        num_bags = len(inputs)
        n = inputs[0].shape[0]
        # TODO(synk): equal-size bags assumed (torch.split with per-bag sizes
        # would need a ragged / masked variant).
        all_images = jnp.concatenate(inputs, axis=0)           # torch.cat(input, 0)
        x_flat = _flatten_pad(all_images, d)                   # (num_bags*n, in_pad)

        bt = _pick_bag_tile(num_bags, n)
        num_bags_pad = _round_up(num_bags, bt)
        if num_bags_pad != num_bags:
            x_flat = jnp.pad(x_flat, ((0, (num_bags_pad - num_bags) * n), (0, 0)))
        num_steps = num_bags_pad // bt
        x3 = x_flat.reshape(num_steps, bt * n, d["in_pad"])

        bag_raw, inst_raw, proj_raw = fused_bag_forward(x3, model, bt, n)

        bag_pred = bag_raw.reshape(num_bags_pad, c_pad)[:num_bags, :num_classes]
        # returned as a (num_bags, n) array (equal-size bags) instead of a
        # Python list of per-bag tensors, per perf feedback.
        bag_instance_predictions = \
            inst_raw[:, :, 0].reshape(num_bags_pad, n)[:num_bags]
        proj = None
        if projector:
            proj = proj_raw.reshape(num_bags_pad * n, fd_pad)[:num_bags * n,
                                                              :feat_dim]
        return bag_pred, bag_instance_predictions, None, proj

    # pred_on=False: only the projector output is observable.
    if not projector:
        return None, None, None, None
    x_flat = _flatten_pad(inputs, d)
    rows = x_flat.shape[0]
    tile_m = 512 if rows >= 512 else _round_up(rows, 8)
    padded_rows = _round_up(rows, tile_m)
    if padded_rows != rows:
        x_flat = jnp.pad(x_flat, ((0, padded_rows - rows), (0, 0)))
    proj = enc_proj_forward(x_flat, model, tile_m)[:rows, :feat_dim]
    return None, None, None, proj


# ----------------------------------------------------------------------------
# pure-JAX reference (same bf16-rounded weights / inputs) for parity checks
# ----------------------------------------------------------------------------
def _reference_forward(x_flat_bf16, model, num_bags, n):
    f32 = jnp.float32
    d = model["dims"]
    L_p = d["L_pad"]
    x = x_flat_bf16.astype(f32)
    feat = jnp.maximum(x @ model["enc_w"].astype(f32) + model["enc_b"], 0.0)
    fb = feat.astype(jnp.bfloat16).astype(f32)
    z = fb @ model["attproj_w"].astype(f32) + model["attproj_b"]
    a_v = jnp.tanh(z[:, :L_p])
    a_u = jax.nn.sigmoid(z[:, L_p:2 * L_p])
    hdn = jnp.maximum(z[:, 2 * L_p:], 0.0)
    sc = (a_v * a_u) @ model["att_w_row"].T + model["att_w_b"]      # (N, 1)
    sc_b = sc.reshape(num_bags, n)
    attn = jax.nn.softmax(sc_b, axis=1)
    wf = jnp.einsum("bi,bif->bf", attn, feat.reshape(num_bags, n, -1))
    y = jax.nn.sigmoid(wf @ model["cls_row"].T + model["cls_b"])
    inst = jax.nn.sigmoid(sc_b)
    p = (hdn.astype(jnp.bfloat16).astype(f32) @ model["proj2_w"].astype(f32)
         + model["proj2_b"])
    proj = p * jax.lax.rsqrt(jnp.maximum(jnp.sum(p * p, -1, keepdims=True),
                                         1e-24))
    return (y[:, :d["num_classes"]], inst, proj[:, :d["feat_dim"]])


if __name__ == "__main__":
    num_bags, n_inst, C, H, W = 2, 8, 4, 16, 16
    nf, L, num_classes = 64, 256, 1          # L=256 matches Linear_Classifier default
    proj_hidden, feat_dim = 64, 32

    key = jax.random.PRNGKey(0)
    k_data, k_params = jax.random.split(key)
    bag_keys = jax.random.split(k_data, num_bags)
    bags = [jax.random.normal(bk, (n_inst, C, H, W), jnp.float32)
            for bk in bag_keys]

    model = build_model(k_params, C * H * W, nf, L, num_classes,
                        proj_hidden, feat_dim)

    # main path: pred_on=True, projector=True (single fused kernel)
    bag_pred, inst_preds, _, proj = embeddingmodel_forward(
        bags, model, projector=True, pred_on=True)
    jax.block_until_ready((bag_pred, inst_preds, proj))

    assert bag_pred.shape == (num_bags, num_classes)
    assert inst_preds.shape == (num_bags, n_inst)
    assert proj.shape == (num_bags * n_inst, feat_dim)
    assert bool(jnp.all(jnp.isfinite(bag_pred)))
    assert bool(jnp.all(jnp.isfinite(proj)))
    assert bool(jnp.all((bag_pred >= 0.0) & (bag_pred <= 1.0)))
    norms = jnp.sqrt(jnp.sum(proj * proj, axis=1))
    assert bool(jnp.all(jnp.abs(norms - 1.0) < 1e-2))

    # parity vs pure-JAX reference (same bf16-rounded weights / inputs)
    x_flat_ref = _flatten_pad(jnp.concatenate(bags, axis=0), model["dims"])
    ref_bag, ref_inst, ref_proj = _reference_forward(x_flat_ref, model,
                                                     num_bags, n_inst)
    assert bool(jnp.allclose(bag_pred, ref_bag, atol=2e-2))
    assert bool(jnp.allclose(inst_preds, ref_inst, atol=2e-2))
    assert bool(jnp.allclose(proj, ref_proj, atol=2e-2))

    # projector-only path: pred_on=False (row-tiled encoder+projector kernel)
    all_images = jnp.concatenate(bags, axis=0)
    _, _, _, proj2 = embeddingmodel_forward(
        all_images, model, projector=True, pred_on=False)
    jax.block_until_ready(proj2)
    assert proj2.shape == (num_bags * n_inst, feat_dim)
    assert bool(jnp.all(jnp.isfinite(proj2)))
    assert bool(jnp.allclose(proj2, ref_proj, atol=2e-2))

    print("KERNEL_OK")
</pallas_src>

<mosaic_0001>
module attributes {stable_mosaic.version = 11 : i64} {
  func.func @kernel(%arg0: i32, %arg1: i32, %arg2: memref<1x16x1024xbf16, #tpu.memory_space<vmem>>, %arg3: memref<1024x128xbf16, #tpu.memory_space<vmem>>, %arg4: memref<1x128xf32, #tpu.memory_space<vmem>>, %arg5: memref<128x640xbf16, #tpu.memory_space<vmem>>, %arg6: memref<1x640xf32, #tpu.memory_space<vmem>>, %arg7: memref<1x256xf32, #tpu.memory_space<vmem>>, %arg8: memref<1x1xf32, #tpu.memory_space<vmem>>, %arg9: memref<1x128xf32, #tpu.memory_space<vmem>>, %arg10: memref<1x1xf32, #tpu.memory_space<vmem>>, %arg11: memref<128x128xbf16, #tpu.memory_space<vmem>>, %arg12: memref<1x128xf32, #tpu.memory_space<vmem>>, %arg13: memref<1x2x128xf32, #tpu.memory_space<vmem>>, %arg14: memref<1x16x128xf32, #tpu.memory_space<vmem>>, %arg15: memref<1x16x128xf32, #tpu.memory_space<vmem>>, %arg16: memref<16x128xf32, #tpu.memory_space<vmem>>) attributes {dimension_semantics = [#tpu.dimension_semantics<parallel>, #tpu.dimension_semantics<arbitrary>], iteration_bounds = array<i64: 1, 1>, scalar_prefetch = 0 : i64, scratch_operands = 1 : i64, tpu.core_type = #tpu.core_type<tc>, window_params = [{transform_indices = @transform_0, window_bounds = array<i64: 1, 16, 1024>}, {transform_indices = @transform_1, window_bounds = array<i64: 1024, 128>}, {pipeline_mode = #tpu.pipeline_mode<synchronous>, transform_indices = @transform_2, window_bounds = array<i64: 1, 128>}, {pipeline_mode = #tpu.pipeline_mode<synchronous>, transform_indices = @transform_3, window_bounds = array<i64: 128, 640>}, {pipeline_mode = #tpu.pipeline_mode<synchronous>, transform_indices = @transform_4, window_bounds = array<i64: 1, 640>}, {pipeline_mode = #tpu.pipeline_mode<synchronous>, transform_indices = @transform_5, window_bounds = array<i64: 1, 256>}, {pipeline_mode = #tpu.pipeline_mode<synchronous>, transform_indices = @transform_6, window_bounds = array<i64: 1, 1>}, {pipeline_mode = #tpu.pipeline_mode<synchronous>, transform_indices = @transform_7, window_bounds = array<i64: 1, 128>}, {pipeline_mode = #tpu.pipeline_mode<synchronous>, transform_indices = @transform_8, window_bounds = array<i64: 1, 1>}, {pipeline_mode = #tpu.pipeline_mode<synchronous>, transform_indices = @transform_9, window_bounds = array<i64: 128, 128>}, {pipeline_mode = #tpu.pipeline_mode<synchronous>, transform_indices = @transform_10, window_bounds = array<i64: 1, 128>}, {transform_indices = @transform_11, window_bounds = array<i64: 1, 2, 128>}, {transform_indices = @transform_12, window_bounds = array<i64: 1, 16, 128>}, {transform_indices = @transform_13, window_bounds = array<i64: 1, 16, 128>}]} {
    %c0_i32 = arith.constant 0 : i32
    %0 = arith.cmpi eq, %arg1, %c0_i32 : i32
    %1 = arith.extui %0 : i1 to i32
    %c0_i32_0 = arith.constant 0 : i32
    %2 = arith.cmpi ne, %1, %c0_i32_0 : i32
    scf.if %2 {
      %cst_11 = arith.constant 0.000000e+00 : f32
      %13 = vector.broadcast %cst_11 : f32 to vector<16x128xf32>
      %c0_12 = arith.constant 0 : index
      %c0_13 = arith.constant 0 : index
      %14 = vector.load %arg16[%c0_12, %c0_13] : memref<16x128xf32, #tpu.memory_space<vmem>>, vector<16x128xf32>
      tpu.vector_store %arg16[%c0_12, %c0_13], %13 {strides = array<i32>} : memref<16x128xf32, #tpu.memory_space<vmem>>, vector<16x128xf32>,
    } else {
    }
    %c0 = arith.constant 0 : index
    %c0_1 = arith.constant 0 : index
    %3 = vector.load %arg16[%c0, %c0_1] : memref<16x128xf32, #tpu.memory_space<vmem>>, vector<16x128xf32>
    %c0_2 = arith.constant 0 : index
    %c0_3 = arith.constant 0 : index
    %c0_4 = arith.constant 0 : index
    %4 = vector.load %arg2[%c0_2, %c0_3, %c0_4] : memref<1x16x1024xbf16, #tpu.memory_space<vmem>>, vector<1x16x1024xbf16>
    %5 = vector.shape_cast %4 : vector<1x16x1024xbf16> to vector<16x1024xbf16>
    %c0_5 = arith.constant 0 : index
    %c0_6 = arith.constant 0 : index
    %6 = vector.load %arg3[%c0_5, %c0_6] : memref<1024x128xbf16, #tpu.memory_space<vmem>>, vector<1024x128xbf16>
    %cst = arith.constant dense<0.000000e+00> : vector<16x128xf32>
    %7 = tpu.matmul %5, %6, %cst {dimension_numbers = #tpu.dot_dimension_numbers<[1], [0], [0], [1], [0, 0, 1, 1], [], []>} : vector<16x1024xbf16>, vector<1024x128xbf16>, vector<16x128xf32> -> vector<16x128xf32>
    %8 = arith.addf %3, %7 : vector<16x128xf32>
    %c0_7 = arith.constant 0 : index
    %c0_8 = arith.constant 0 : index
    %9 = vector.load %arg16[%c0_7, %c0_8] : memref<16x128xf32, #tpu.memory_space<vmem>>, vector<16x128xf32>
    tpu.vector_store %arg16[%c0_7, %c0_8], %8 {strides = array<i32>} : memref<16x128xf32, #tpu.memory_space<vmem>>, vector<16x128xf32>,
    %c0_i32_9 = arith.constant 0 : i32
    %10 = arith.cmpi eq, %arg1, %c0_i32_9 : i32
    %11 = arith.extui %10 : i1 to i32
    %c0_i32_10 = arith.constant 0 : i32
    %12 = arith.cmpi ne, %11, %c0_i32_10 : i32
    scf.if %12 {
      %c0_11 = arith.constant 0 : index
      %c0_12 = arith.constant 0 : index
      %13 = vector.load %arg16[%c0_11, %c0_12] : memref<16x128xf32, #tpu.memory_space<vmem>>, vector<16x128xf32>
      %c0_13 = arith.constant 0 : index
      %c0_14 = arith.constant 0 : index
      %14 = vector.load %arg4[%c0_13, %c0_14] : memref<1x128xf32, #tpu.memory_space<vmem>>, vector<1x128xf32>
      %15 = vector.broadcast %14 : vector<1x128xf32> to vector<16x128xf32>
      %16 = arith.addf %13, %15 : vector<16x128xf32>
      %cst_15 = arith.constant 0.000000e+00 : f32
      %17 = vector.broadcast %cst_15 : f32 to vector<16x128xf32>
      %18 = arith.maximumf %16, %17 : vector<16x128xf32>
      %19 = arith.truncf %18 : vector<16x128xf32> to vector<16x128xbf16>
      %c0_16 = arith.constant 0 : index
      %c0_17 = arith.constant 0 : index
      %20 = vector.load %arg5[%c0_16, %c0_17] : memref<128x640xbf16, #tpu.memory_space<vmem>>, vector<128x640xbf16>
      %cst_18 = arith.constant dense<0.000000e+00> : vector<16x640xf32>
      %21 = tpu.matmul %19, %20, %cst_18 {dimension_numbers = #tpu.dot_dimension_numbers<[1], [0], [0], [1], [0, 0, 1, 1], [], []>} : vector<16x128xbf16>, vector<128x640xbf16>, vector<16x640xf32> -> vector<16x640xf32>
      %c0_19 = arith.constant 0 : index
      %c0_20 = arith.constant 0 : index
      %22 = vector.load %arg6[%c0_19, %c0_20] : memref<1x640xf32, #tpu.memory_space<vmem>>, vector<1x640xf32>
      %23 = vector.broadcast %22 : vector<1x640xf32> to vector<16x640xf32>
      %24 = arith.addf %21, %23 : vector<16x640xf32>
      %25 = vector.extract_strided_slice %24 {offsets = [0, 0], sizes = [16, 256], strides = [1, 1]} : vector<16x640xf32> to vector<16x256xf32>
      %26 = math.tanh %25 : vector<16x256xf32>
      %27 = vector.extract_strided_slice %24 {offsets = [0, 256], sizes = [16, 256], strides = [1, 1]} : vector<16x640xf32> to vector<16x256xf32>
      %28 = arith.negf %27 : vector<16x256xf32>
      %29 = math.exp %28 : vector<16x256xf32>
      %cst_21 = arith.constant 1.000000e+00 : f32
      %30 = vector.broadcast %cst_21 : f32 to vector<16x256xf32>
      %31 = arith.addf %30, %29 : vector<16x256xf32>
      %32 = arith.divf %30, %31 : vector<16x256xf32>
      %33 = vector.extract_strided_slice %24 {offsets = [0, 512], sizes = [16, 128], strides = [1, 1]} : vector<16x640xf32> to vector<16x128xf32>
      %cst_22 = arith.constant 0.000000e+00 : f32
      %34 = vector.broadcast %cst_22 : f32 to vector<16x128xf32>
      %35 = arith.maximumf %33, %34 : vector<16x128xf32>
      %36 = arith.mulf %26, %32 : vector<16x256xf32>
      %c0_23 = arith.constant 0 : index
      %c0_24 = arith.constant 0 : index
      %37 = vector.load %arg7[%c0_23, %c0_24] : memref<1x256xf32, #tpu.memory_space<vmem>>, vector<1x256xf32>
      %38 = vector.broadcast %37 : vector<1x256xf32> to vector<16x256xf32>
      %39 = arith.mulf %36, %38 : vector<16x256xf32>
      %cst_25 = arith.constant dense<0.000000e+00> : vector<16xf32>
      %40 = vector.multi_reduction <add>, %39, %cst_25 [1] : vector<16x256xf32> to vector<16xf32>
      %41 = vector.shape_cast %40 : vector<16xf32> to vector<16x1xf32>
      %c0_26 = arith.constant 0 : index
      %c0_27 = arith.constant 0 : index
      %42 = vector.load %arg8[%c0_26, %c0_27] : memref<1x1xf32, #tpu.memory_space<vmem>>, vector<1x1xf32>
      %43 = vector.broadcast %42 : vector<1x1xf32> to vector<16x1xf32>
      %44 = arith.addf %41, %43 : vector<16x1xf32>
      %45 = vector.shape_cast %44 : vector<16x1xf32> to vector<2x8x1xf32>
      %cst_28 = arith.constant dense<0xFF800000> : vector<2x1xf32>
      %46 = vector.multi_reduction <maximumf>, %45, %cst_28 [1] : vector<2x8x1xf32> to vector<2x1xf32>
      %47 = vector.shape_cast %46 : vector<2x1xf32> to vector<2x1x1xf32>
      %48 = vector.broadcast %47 : vector<2x1x1xf32> to vector<2x8x1xf32>
      %49 = arith.subf %45, %48 : vector<2x8x1xf32>
      %50 = math.exp %49 : vector<2x8x1xf32>
      %cst_29 = arith.constant dense<0.000000e+00> : vector<2x1xf32>
      %51 = vector.multi_reduction <add>, %50, %cst_29 [1] : vector<2x8x1xf32> to vector<2x1xf32>
      %52 = vector.shape_cast %51 : vector<2x1xf32> to vector<2x1x1xf32>
      %53 = tpu.reciprocal %52 {approx = true} : vector<2x1x1xf32> -> vector<2x1x1xf32>
      %54 = vector.broadcast %53 : vector<2x1x1xf32> to vector<2x8x1xf32>
      %55 = arith.mulf %50, %54 : vector<2x8x1xf32>
      %56 = vector.shape_cast %18 : vector<16x128xf32> to vector<2x8x128xf32>
      %57 = vector.broadcast %55 : vector<2x8x1xf32> to vector<2x8x128xf32>
      %58 = arith.mulf %57, %56 : vector<2x8x128xf32>
      %cst_30 = arith.constant dense<0.000000e+00> : vector<2x128xf32>
      %59 = vector.multi_reduction <add>, %58, %cst_30 [1] : vector<2x8x128xf32> to vector<2x128xf32>
      %c0_31 = arith.constant 0 : index
      %c0_32 = arith.constant 0 : index
      %60 = vector.load %arg9[%c0_31, %c0_32] : memref<1x128xf32, #tpu.memory_space<vmem>>, vector<1x128xf32>
      %61 = vector.broadcast %60 : vector<1x128xf32> to vector<2x128xf32>
      %62 = arith.mulf %59, %61 : vector<2x128xf32>
      %cst_33 = arith.constant dense<0.000000e+00> : vector<2xf32>
      %63 = vector.multi_reduction <add>, %62, %cst_33 [1] : vector<2x128xf32> to vector<2xf32>
      %64 = vector.shape_cast %63 : vector<2xf32> to vector<2x1xf32>
      %c0_34 = arith.constant 0 : index
      %c0_35 = arith.constant 0 : index
      %65 = vector.load %arg10[%c0_34, %c0_35] : memref<1x1xf32, #tpu.memory_space<vmem>>, vector<1x1xf32>
      %66 = vector.broadcast %65 : vector<1x1xf32> to vector<2x1xf32>
      %67 = arith.addf %64, %66 : vector<2x1xf32>
      %68 = tpu.iota {dimensions = array<i32: 1>} : vector<2x128xi32>
      %c1_i32 = arith.constant 1 : i32
      %69 = vector.broadcast %c1_i32 : i32 to vector<2x128xi32>
      %70 = arith.cmpi slt, %68, %69 : vector<2x128xi32>
      %71 = arith.negf %67 : vector<2x1xf32>
      %72 = math.exp %71 : vector<2x1xf32>
      %cst_36 = arith.constant 1.000000e+00 : f32
      %73 = vector.broadcast %cst_36 : f32 to vector<2x1xf32>
      %74 = arith.addf %73, %72 : vector<2x1xf32>
      %75 = arith.divf %73, %74 : vector<2x1xf32>
      %cst_37 = arith.constant 0.000000e+00 : f32
      %76 = vector.shape_cast %75 : vector<2x1xf32> to vector<2x1xf32>
      %77 = vector.broadcast %76 : vector<2x1xf32> to vector<2x128xf32>
      %78 = vector.broadcast %cst_37 : f32 to vector<2x128xf32>
      %79 = arith.select %70, %77, %78 : vector<2x128xi1>, vector<2x128xf32>
      %c0_38 = arith.constant 0 : index
      %c0_39 = arith.constant 0 : index
      %c0_40 = arith.constant 0 : index
      %80 = vector.load %arg13[%c0_38, %c0_39, %c0_40] : memref<1x2x128xf32, #tpu.memory_space<vmem>>, vector<1x2x128xf32>
      %81 = vector.shape_cast %80 : vector<1x2x128xf32> to vector<2x128xf32>
      %82 = vector.shape_cast %79 : vector<2x128xf32> to vector<1x2x128xf32>
      tpu.vector_store %arg13[%c0_38, %c0_39, %c0_40], %82 {strides = array<i32>} : memref<1x2x128xf32, #tpu.memory_space<vmem>>, vector<1x2x128xf32>,
      %83 = tpu.iota {dimensions = array<i32: 1>} : vector<16x128xi32>
      %c0_i32_41 = arith.constant 0 : i32
      %84 = vector.broadcast %c0_i32_41 : i32 to vector<16x128xi32>
      %85 = arith.cmpi eq, %83, %84 : vector<16x128xi32>
      %86 = arith.negf %44 : vector<16x1xf32>
      %87 = math.exp %86 : vector<16x1xf32>
      %cst_42 = arith.constant 1.000000e+00 : f32
      %88 = vector.broadcast %cst_42 : f32 to vector<16x1xf32>
      %89 = arith.addf %88, %87 : vector<16x1xf32>
      %90 = arith.divf %88, %89 : vector<16x1xf32>
      %cst_43 = arith.constant 0.000000e+00 : f32
      %91 = vector.shape_cast %90 : vector<16x1xf32> to vector<16x1xf32>
      %92 = vector.broadcast %91 : vector<16x1xf32> to vector<16x128xf32>
      %93 = vector.broadcast %cst_43 : f32 to vector<16x128xf32>
      %94 = arith.select %85, %92, %93 : vector<16x128xi1>, vector<16x128xf32>
      %c0_44 = arith.constant 0 : index
      %c0_45 = arith.constant 0 : index
      %c0_46 = arith.constant 0 : index
      %95 = vector.load %arg14[%c0_44, %c0_45, %c0_46] : memref<1x16x128xf32, #tpu.memory_space<vmem>>, vector<1x16x128xf32>
      %96 = vector.shape_cast %95 : vector<1x16x128xf32> to vector<16x128xf32>
      %97 = vector.shape_cast %94 : vector<16x128xf32> to vector<1x16x128xf32>
      tpu.vector_store %arg14[%c0_44, %c0_45, %c0_46], %97 {strides = array<i32>} : memref<1x16x128xf32, #tpu.memory_space<vmem>>, vector<1x16x128xf32>,
      %98 = arith.truncf %35 : vector<16x128xf32> to vector<16x128xbf16>
      %c0_47 = arith.constant 0 : index
      %c0_48 = arith.constant 0 : index
      %99 = vector.load %arg11[%c0_47, %c0_48] : memref<128x128xbf16, #tpu.memory_space<vmem>>, vector<128x128xbf16>
      %cst_49 = arith.constant dense<0.000000e+00> : vector<16x128xf32>
      %100 = tpu.matmul %98, %99, %cst_49 {dimension_numbers = #tpu.dot_dimension_numbers<[1], [0], [0], [1], [0, 0, 1, 1], [], []>} : vector<16x128xbf16>, vector<128x128xbf16>, vector<16x128xf32> -> vector<16x128xf32>
      %c0_50 = arith.constant 0 : index
      %c0_51 = arith.constant 0 : index
      %101 = vector.load %arg12[%c0_50, %c0_51] : memref<1x128xf32, #tpu.memory_space<vmem>>, vector<1x128xf32>
      %102 = vector.broadcast %101 : vector<1x128xf32> to vector<16x128xf32>
      %103 = arith.addf %100, %102 : vector<16x128xf32>
      %104 = arith.mulf %103, %103 : vector<16x128xf32>
      %cst_52 = arith.constant dense<0.000000e+00> : vector<16xf32>
      %105 = vector.multi_reduction <add>, %104, %cst_52 [1] : vector<16x128xf32> to vector<16xf32>
      %106 = vector.shape_cast %105 : vector<16xf32> to vector<16x1xf32>
      %cst_53 = arith.constant 1.000000e-24 : f32
      %107 = vector.broadcast %cst_53 : f32 to vector<16x1xf32>
      %108 = arith.maximumf %106, %107 : vector<16x1xf32>
      %109 = math.rsqrt %108 : vector<16x1xf32>
      %110 = vector.broadcast %109 : vector<16x1xf32> to vector<16x128xf32>
      %111 = arith.mulf %103, %110 : vector<16x128xf32>
      %c0_54 = arith.constant 0 : index
      %c0_55 = arith.constant 0 : index
      %c0_56 = arith.constant 0 : index
      %112 = vector.load %arg15[%c0_54, %c0_55, %c0_56] : memref<1x16x128xf32, #tpu.memory_space<vmem>>, vector<1x16x128xf32>
      %113 = vector.shape_cast %112 : vector<1x16x128xf32> to vector<16x128xf32>
      %114 = vector.shape_cast %111 : vector<16x128xf32> to vector<1x16x128xf32>
      tpu.vector_store %arg15[%c0_54, %c0_55, %c0_56], %114 {strides = array<i32>} : memref<1x16x128xf32, #tpu.memory_space<vmem>>, vector<1x16x128xf32>,
    } else {
    }
    return
  }
  func.func @transform_0(%arg0: i32, %arg1: i32) -> (i32, i32, i32) {
    %c0_i32 = arith.constant 0 : i32
    %c0_i32_0 = arith.constant 0 : i32
    return %arg0, %c0_i32, %arg1 : i32, i32, i32
  }
  func.func @transform_1(%arg0: i32, %arg1: i32) -> (i32, i32) {
    %c0_i32 = arith.constant 0 : i32
    %c0_i32_0 = arith.constant 0 : i32
    return %arg1, %c0_i32 : i32, i32
  }
  func.func @transform_2(%arg0: i32, %arg1: i32) -> (i32, i32) {
    %c0_i32 = arith.constant 0 : i32
    %c0_i32_0 = arith.constant 0 : i32
    %c0_i32_1 = arith.constant 0 : i32
    return %c0_i32, %c0_i32_0 : i32, i32
  }
  func.func @transform_3(%arg0: i32, %arg1: i32) -> (i32, i32) {
    %c0_i32 = arith.constant 0 : i32
    %c0_i32_0 = arith.constant 0 : i32
    %c0_i32_1 = arith.constant 0 : i32
    return %c0_i32, %c0_i32_0 : i32, i32
  }
  func.func @transform_4(%arg0: i32, %arg1: i32) -> (i32, i32) {
    %c0_i32 = arith.constant 0 : i32
    %c0_i32_0 = arith.constant 0 : i32
    %c0_i32_1 = arith.constant 0 : i32
    return %c0_i32, %c0_i32_0 : i32, i32
  }
  func.func @transform_5(%arg0: i32, %arg1: i32) -> (i32, i32) {
    %c0_i32 = arith.constant 0 : i32
    %c0_i32_0 = arith.constant 0 : i32
    %c0_i32_1 = arith.constant 0 : i32
    return %c0_i32, %c0_i32_0 : i32, i32
  }
  func.func @transform_6(%arg0: i32, %arg1: i32) -> (i32, i32) {
    %c0_i32 = arith.constant 0 : i32
    %c0_i32_0 = arith.constant 0 : i32
    %c0_i32_1 = arith.constant 0 : i32
    return %c0_i32, %c0_i32_0 : i32, i32
  }
  func.func @transform_7(%arg0: i32, %arg1: i32) -> (i32, i32) {
    %c0_i32 = arith.constant 0 : i32
    %c0_i32_0 = arith.constant 0 : i32
    %c0_i32_1 = arith.constant 0 : i32
    return %c0_i32, %c0_i32_0 : i32, i32
  }
  func.func @transform_8(%arg0: i32, %arg1: i32) -> (i32, i32) {
    %c0_i32 = arith.constant 0 : i32
    %c0_i32_0 = arith.constant 0 : i32
    %c0_i32_1 = arith.constant 0 : i32
    return %c0_i32, %c0_i32_0 : i32, i32
  }
  func.func @transform_9(%arg0: i32, %arg1: i32) -> (i32, i32) {
    %c0_i32 = arith.constant 0 : i32
    %c0_i32_0 = arith.constant 0 : i32
    %c0_i32_1 = arith.constant 0 : i32
    return %c0_i32, %c0_i32_0 : i32, i32
  }
  func.func @transform_10(%arg0: i32, %arg1: i32) -> (i32, i32) {
    %c0_i32 = arith.constant 0 : i32
    %c0_i32_0 = arith.constant 0 : i32
    %c0_i32_1 = arith.constant 0 : i32
    return %c0_i32, %c0_i32_0 : i32, i32
  }
  func.func @transform_11(%arg0: i32, %arg1: i32) -> (i32, i32, i32) {
    %c0_i32 = arith.constant 0 : i32
    %c0_i32_0 = arith.constant 0 : i32
    %c0_i32_1 = arith.constant 0 : i32
    return %arg0, %c0_i32, %c0_i32_0 : i32, i32, i32
  }
  func.func @transform_12(%arg0: i32, %arg1: i32) -> (i32, i32, i32) {
    %c0_i32 = arith.constant 0 : i32
    %c0_i32_0 = arith.constant 0 : i32
    %c0_i32_1 = arith.constant 0 : i32
    return %arg0, %c0_i32, %c0_i32_0 : i32, i32, i32
  }
  func.func @transform_13(%arg0: i32, %arg1: i32) -> (i32, i32, i32) {
    %c0_i32 = arith.constant 0 : i32
    %c0_i32_0 = arith.constant 0 : i32
    %c0_i32_1 = arith.constant 0 : i32
    return %arg0, %c0_i32, %c0_i32_0 : i32, i32, i32
  }
}

</mosaic_0001>

<llo_original>
// kernel: tpu_custom_call.1
$region0: #{tpu_custom_call.1}
  #allocation0 [shape = 'u32[]', space=smem, size = 0x4, offset = 0x4, fixed_abs, tag = 'smem constant byte address 0x4 - core index']
  #allocation1 [shape = 'u32[72,128]{1,0:T(1,128)}', space=vmem, size = 0x9000, scoped, tag = 'internal scratch']
  #allocation2 [shape = 'f32[16,128]{1,0:T(8,128)}', space=vmem, size = 0x2000, scoped, tag = 'scratch operand']
  #allocation3 [shape = 'f32[1,1]{1,0:T(1,128)S(1)}', space=vmem, size = 0x200, scoped, tag = 'scoped memory for tpu_custom_call.1']
  #allocation4 [shape = 'f32[1,1]{1,0:T(1,128)S(1)}', space=vmem, size = 0x200, scoped, tag = 'scoped memory for tpu_custom_call.1']
  %s0 = inlined_call_operand.hbm [shape: bf16[1,16,1024], index: 0, kind: input, shape index: {}]
  %s1 = inlined_call_operand.hbm [shape: bf16[1024,128], index: 1, kind: input, shape index: {}]
  %s2 = inlined_call_operand.hbm [shape: f32[1,128], index: 2, kind: input, shape index: {}]
  %s3 = inlined_call_operand.hbm [shape: bf16[128,640], index: 3, kind: input, shape index: {}]
  %s4 = inlined_call_operand.vmem [shape: f32[1,640], index: 4, kind: input, shape index: {}]
  %s5 = inlined_call_operand.vmem [shape: f32[1,256], index: 5, kind: input, shape index: {}]
  %s6 = inlined_call_operand.<no memory space> [shape: f32[1,1], index: 6, kind: input, shape index: {}]
  %s7 = inlined_call_operand.vmem [shape: f32[1,128], index: 7, kind: input, shape index: {}]
  %s8 = inlined_call_operand.<no memory space> [shape: f32[1,1], index: 8, kind: input, shape index: {}]
  %s9 = inlined_call_operand.hbm [shape: bf16[128,128], index: 9, kind: input, shape index: {}]
  %s10 = inlined_call_operand.vmem [shape: f32[1,128], index: 10, kind: input, shape index: {}]
  %s11 = inlined_call_operand.hbm [shape: f32[1,2,128], index: 11, kind: output, shape index: {0}]
  %s12 = inlined_call_operand.hbm [shape: f32[1,16,128], index: 12, kind: output, shape index: {1}]
  %s13 = inlined_call_operand.hbm [shape: f32[1,16,128], index: 13, kind: output, shape index: {2}]
  %14 = xla_tuple %s11, %s12, %s13
  %s15 = sld [smem:[#allocation0]]
  $region98: #{tpu_custom_call.1} parent=0
    _
  %s17 = ssub.s32 1, %s15
  %s18 = scalar_select 0, %s17, %s15
  %v19 = vstv %s6
  %20 = vst [vmem:[#allocation3] sm:$0x1] %v19
  %v21 = vstv %s8
  %22 = vst [vmem:[#allocation4] sm:$0x1] %v21
  $region1: #{tpu_custom_call.1} parent=0
    #allocation5 [shape = 'u8[32768]{0}', space=vmem, size = 0x8000, scoped, tag = 'input window, operand 0, single buffered']
    #allocation6 [shape = 's32[1]{0}', space=sflag, size = 0x4, scoped, tag = 'scoped memory for tpu_custom_call.1']
    #allocation7 [shape = 's32[1]{0}', space=sflag, size = 0x4, scoped, tag = 'scoped memory for tpu_custom_call.1']
    #allocation8 [shape = 'u8[262144]{0}', space=vmem, size = 0x40000, scoped, tag = 'input window, operand 1, single buffered']
    #allocation9 [shape = 's32[1]{0}', space=sflag, size = 0x4, scoped, tag = 'scoped memory for tpu_custom_call.1']
    #allocation10 [shape = 'u8[512]{0}', space=vmem, size = 0x400, scoped, tag = 'input window, operand 2, single buffered']
    #allocation11 [shape = 'u8[163840]{0}', space=vmem, size = 0x28000, scoped, tag = 'input window, operand 3, single buffered']
    #allocation12 [shape = 's32[1]{0}', space=sflag, size = 0x4, scoped, tag = 'scoped memory for tpu_custom_call.1']
    #allocation13 [shape = 'u8[32768]{0}', space=vmem, size = 0x8000, scoped, tag = 'input window, operand 9, single buffered']
    #allocation14 [shape = 'u8[1024]{0}', space=vmem, size = 0x400, scoped, tag = 'output window, operand 0, single buffered']
    #allocation15 [shape = 'u8[8192]{0}', space=vmem, size = 0x2000, scoped, tag = 'output window, operand 1, single buffered']
    #allocation16 [shape = 's32[1]{0}', space=sflag, size = 0x4, scoped, tag = 'scoped memory for tpu_custom_call.1']
    #allocation17 [shape = 'u8[8192]{0}', space=vmem, size = 0x2000, scoped, tag = 'output window, operand 2, single buffered']
    %23 = vsyncpa [#allocation6], 0
    %24 = vsyncpa [#allocation9], 0
    %25 = vsyncpa [#allocation12], 0
    %26 = vsyncpa [#allocation7], 0
    %27 = vsyncpa [#allocation16], 0
    // Predicated region
    $region2: #{tpu_custom_call.1} parent=1 // pred_check
      _
    $region3: #{tpu_custom_call.1} parent=1 // pred_check_branch
      %29 = sbr.rel (0) target = $region5
    $region4: #{tpu_custom_call.1} parent=1 // pred_region
      %31 = vsyncadd [#allocation6], 0
      %s32 = sshll.u32 %s0, 4
      %s33 = int_to_ptr.hbm [resolvable:$true] %s32
      %s34 = sshll.u32 [#allocation5], 4
      %s35 = int_to_ptr.vmem [resolvable:$true] %s34
      %40 = dma.hbm_to_vmem [thread:$0]  %s33, 1024, %s35, [#allocation6], 512, 512, 32
    $region5: #{tpu_custom_call.1} parent=1 // pred_fallthru
      _
    // Predicated region
    $region6: #{tpu_custom_call.1} parent=1 // pred_check
      _
    $region7: #{tpu_custom_call.1} parent=1 // pred_check_branch
      %42 = sbr.rel (0) target = $region9
    $region8: #{tpu_custom_call.1} parent=1 // pred_region
      %44 = vsyncadd [#allocation9], 0
      %s45 = sshll.u32 %s1, 4
      %s46 = int_to_ptr.hbm [resolvable:$true] %s45
      %s47 = sshll.u32 [#allocation8], 4
      %s48 = int_to_ptr.vmem [resolvable:$true] %s47
      %53 = dma.hbm_to_vmem [thread:$0]  %s46, 8192, %s48, [#allocation9], 64, 64, 4
    $region9: #{tpu_custom_call.1} parent=1 // pred_fallthru
      _
    // Predicated region
    $region10: #{tpu_custom_call.1} parent=1 // pred_check
      _
    $region11: #{tpu_custom_call.1} parent=1 // pred_check_branch
      %55 = sbr.rel (0) target = $region13
    $region12: #{tpu_custom_call.1} parent=1 // pred_region
      %57 = vsyncadd [#allocation9], 0
      %s59 = sshll.u32 %s2, 4
      %s60 = int_to_ptr.hbm [resolvable:$true] %s59
      %s61 = sshll.u32 [#allocation10], 4
      %s62 = int_to_ptr.vmem [resolvable:$true] %s61
      %64 = dma.hbm_to_vmem [thread:$0]  %s60, 16, %s62, [#allocation9]
    $region13: #{tpu_custom_call.1} parent=1 // pred_fallthru
      _
    // Predicated region
    $region14: #{tpu_custom_call.1} parent=1 // pred_check
      _
    $region15: #{tpu_custom_call.1} parent=1 // pred_check_branch
      %66 = sbr.rel (0) target = $region17
    $region16: #{tpu_custom_call.1} parent=1 // pred_region
      %68 = vsyncadd [#allocation12], 0
      %s69 = sshll.u32 %s3, 4
      %s70 = int_to_ptr.hbm [resolvable:$true] %s69
      %s71 = sshll.u32 [#allocation11], 4
      %s72 = int_to_ptr.vmem [resolvable:$true] %s71
      %77 = dma.hbm_to_vmem [thread:$0]  %s70, 5120, %s72, [#allocation12], 320, 320, 20
    $region17: #{tpu_custom_call.1} parent=1 // pred_fallthru
      _
    // Predicated region
    $region18: #{tpu_custom_call.1} parent=1 // pred_check
      _
    $region19: #{tpu_custom_call.1} parent=1 // pred_check_branch
      %79 = sbr.rel (0) target = $region21
    $region20: #{tpu_custom_call.1} parent=1 // pred_region
      _
    $region21: #{tpu_custom_call.1} parent=1 // pred_fallthru
      _
    // Predicated region
    $region22: #{tpu_custom_call.1} parent=1 // pred_check
      _
    $region23: #{tpu_custom_call.1} parent=1 // pred_check_branch
      %81 = sbr.rel (0) target = $region25
    $region24: #{tpu_custom_call.1} parent=1 // pred_region
      _
    $region25: #{tpu_custom_call.1} parent=1 // pred_fallthru
      _
    // Predicated region
    $region26: #{tpu_custom_call.1} parent=1 // pred_check
      _
    $region27: #{tpu_custom_call.1} parent=1 // pred_check_branch
      %83 = sbr.rel (0) target = $region29
    $region28: #{tpu_custom_call.1} parent=1 // pred_region
      _
    $region29: #{tpu_custom_call.1} parent=1 // pred_fallthru
      _
    // Predicated region
    $region30: #{tpu_custom_call.1} parent=1 // pred_check
      _
    $region31: #{tpu_custom_call.1} parent=1 // pred_check_branch
      %85 = sbr.rel (0) target = $region33
    $region32: #{tpu_custom_call.1} parent=1 // pred_region
      _
    $region33: #{tpu_custom_call.1} parent=1 // pred_fallthru
      _
    // Predicated region
    $region34: #{tpu_custom_call.1} parent=1 // pred_check
      _
    $region35: #{tpu_custom_call.1} parent=1 // pred_check_branch
      %87 = sbr.rel (0) target = $region37
    $region36: #{tpu_custom_call.1} parent=1 // pred_region
      _
    $region37: #{tpu_custom_call.1} parent=1 // pred_fallthru
      _
    // Predicated region
    $region38: #{tpu_custom_call.1} parent=1 // pred_check
      _
    $region39: #{tpu_custom_call.1} parent=1 // pred_check_branch
      %89 = sbr.rel (0) target = $region41
    $region40: #{tpu_custom_call.1} parent=1 // pred_region
      %91 = vsyncadd [#allocation12], 0
      %s92 = sshll.u32 %s9, 4
      %s93 = int_to_ptr.hbm [resolvable:$true] %s92
      %s94 = sshll.u32 [#allocation13], 4
      %s95 = int_to_ptr.vmem [resolvable:$true] %s94
      %100 = dma.hbm_to_vmem [thread:$0]  %s93, 1024, %s95, [#allocation12], 64, 64, 4
    $region41: #{tpu_custom_call.1} parent=1 // pred_fallthru
      _
    // Predicated region
    $region42: #{tpu_custom_call.1} parent=1 // pred_check
      _
    $region43: #{tpu_custom_call.1} parent=1 // pred_check_branch
      %102 = sbr.rel (0) target = $region45
    $region44: #{tpu_custom_call.1} parent=1 // pred_region
      _
    $region45: #{tpu_custom_call.1} parent=1 // pred_fallthru
      _
    // Predicated region
    $region46: #{tpu_custom_call.1} parent=1 // pred_check
      _
    $region47: #{tpu_custom_call.1} parent=1 // pred_check_branch
      %104 = sbr.rel (0) target = $region49
    $region48: #{tpu_custom_call.1} parent=1 // pred_region
      %106 = dma.done [#allocation6], 1024
    $region49: #{tpu_custom_call.1} parent=1 // pred_fallthru
      _
    // Predicated region
    $region50: #{tpu_custom_call.1} parent=1 // pred_check
      _
    $region51: #{tpu_custom_call.1} parent=1 // pred_check_branch
      %108 = sbr.rel (0) target = $region53
    $region52: #{tpu_custom_call.1} parent=1 // pred_region
      %110 = dma.done [#allocation9], 8192
    $region53: #{tpu_custom_call.1} parent=1 // pred_fallthru
      _
    // Predicated region
    $region54: #{tpu_custom_call.1} parent=1 // pred_check
      _
    $region55: #{tpu_custom_call.1} parent=1 // pred_check_branch
      %112 = sbr.rel (0) target = $region57
    $region56: #{tpu_custom_call.1} parent=1 // pred_region
      %114 = dma.done [#allocation9], 16
    $region57: #{tpu_custom_call.1} parent=1 // pred_fallthru
      _
    // Predicated region
    $region58: #{tpu_custom_call.1} parent=1 // pred_check
      _
    $region59: #{tpu_custom_call.1} parent=1 // pred_check_branch
      %116 = sbr.rel (0) target = $region61
    $region60: #{tpu_custom_call.1} parent=1 // pred_region
      %118 = dma.done [#allocation12], 5120
    $region61: #{tpu_custom_call.1} parent=1 // pred_fallthru
      _
    // Predicated region
    $region62: #{tpu_custom_call.1} parent=1 // pred_check
      _
    $region63: #{tpu_custom_call.1} parent=1 // pred_check_branch
      %120 = sbr.rel (0) target = $region65
    $region64: #{tpu_custom_call.1} parent=1 // pred_region
      %122 = dma.done [#allocation12], 1024
    $region65: #{tpu_custom_call.1} parent=1 // pred_fallthru
      _
    %p123 = scmp.eq.s32.totalorder 0, 0
    // Predicated region
    $region66: #{tpu_custom_call.1} parent=1 // pred_check
      %p124 = pneg %p123
    $region67: #{tpu_custom_call.1} parent=1 // pred_check_branch
      %126 = sbr.rel (%p124) target = $region69
    $region68: #{tpu_custom_call.1} parent=1 // pred_region
      %127 = vst [vmem:[#allocation2] sm:$0xff] 0.0
      %128 = vst [vmem:[#allocation2 + $0x8] sm:$0xff] 0.0
    $region69: #{tpu_custom_call.1} parent=1 // pred_fallthru
      _
    %v129 = vld [vmem:[#allocation2] sm:$0xff]
    %v130 = vld [vmem:[#allocation2 + $0x8] sm:$0xff]
    %v131 = vld [vmem:[#allocation5] sm:$0xff]
    %v132 = vld [vmem:[#allocation5 + $0x8] sm:$0xff]
    %v133 = vld [vmem:[#allocation5 + $0x10] sm:$0xff]
    %v134 = vld [vmem:[#allocation5 + $0x18] sm:$0xff]
    %v135 = vld [vmem:[#allocation5 + $0x20] sm:$0xff]
    %v136 = vld [vmem:[#allocation5 + $0x28] sm:$0xff]
    %v137 = vld [vmem:[#allocation5 + $0x30] sm:$0xff]
    %v138 = vld [vmem:[#allocation5 + $0x38] sm:$0xff]
    %v139 = vld [vmem:[#allocation8] sm:$0xf]
    %v140 = vld [vmem:[#allocation8 + $0x4] sm:$0xf]
    %v141 = vld [vmem:[#allocation8 + $0x8] sm:$0xf]
    %v142 = vld [vmem:[#allocation8 + $0xc] sm:$0xf]
    %v143 = vld [vmem:[#allocation8 + $0x10] sm:$0xf]
    %v144 = vld [vmem:[#allocation8 + $0x14] sm:$0xf]
    %v145 = vld [vmem:[#allocation8 + $0x18] sm:$0xf]
    %v146 = vld [vmem:[#allocation8 + $0x1c] sm:$0xf]
    %v147 = vld [vmem:[#allocation8 + $0x20] sm:$0xf]
    %v148 = vld [vmem:[#allocation8 + $0x24] sm:$0xf]
    %v149 = vld [vmem:[#allocation8 + $0x28] sm:$0xf]
    %v150 = vld [vmem:[#allocation8 + $0x2c] sm:$0xf]
    %v151 = vld [vmem:[#allocation8 + $0x30] sm:$0xf]
    %v152 = vld [vmem:[#allocation8 + $0x34] sm:$0xf]
    %v153 = vld [vmem:[#allocation8 + $0x38] sm:$0xf]
    %v154 = vld [vmem:[#allocation8 + $0x3c] sm:$0xf]
    %v155 = vld [vmem:[#allocation8 + $0x40] sm:$0xf]
    %v156 = vld [vmem:[#allocation8 + $0x44] sm:$0xf]
    %v157 = vld [vmem:[#allocation8 + $0x48] sm:$0xf]
    %v158 = vld [vmem:[#allocation8 + $0x4c] sm:$0xf]
    %v159 = vld [vmem:[#allocation8 + $0x50] sm:$0xf]
    %v160 = vld [vmem:[#allocation8 + $0x54] sm:$0xf]
    %v161 = vld [vmem:[#allocation8 + $0x58] sm:$0xf]
    %v162 = vld [vmem:[#allocation8 + $0x5c] sm:$0xf]
    %v163 = vld [vmem:[#allocation8 + $0x60] sm:$0xf]
    %v164 = vld [vmem:[#allocation8 + $0x64] sm:$0xf]
    %v165 = vld [vmem:[#allocation8 + $0x68] sm:$0xf]
    %v166 = vld [vmem:[#allocation8 + $0x6c] sm:$0xf]
    %v167 = vld [vmem:[#allocation8 + $0x70] sm:$0xf]
    %v168 = vld [vmem:[#allocation8 + $0x74] sm:$0xf]
    %v169 = vld [vmem:[#allocation8 + $0x78] sm:$0xf]
    %v170 = vld [vmem:[#allocation8 + $0x7c] sm:$0xf]
    %v171 = vld [vmem:[#allocation8 + $0x80] sm:$0xf]
    %v172 = vld [vmem:[#allocation8 + $0x84] sm:$0xf]
    %v173 = vld [vmem:[#allocation8 + $0x88] sm:$0xf]
    %v174 = vld [vmem:[#allocation8 + $0x8c] sm:$0xf]
    %v175 = vld [vmem:[#allocation8 + $0x90] sm:$0xf]
    %v176 = vld [vmem:[#allocation8 + $0x94] sm:$0xf]
    %v177 = vld [vmem:[#allocation8 + $0x98] sm:$0xf]
    %v178 = vld [vmem:[#allocation8 + $0x9c] sm:$0xf]
    %v179 = vld [vmem:[#allocation8 + $0xa0] sm:$0xf]
    %v180 = vld [vmem:[#allocation8 + $0xa4] sm:$0xf]
    %v181 = vld [vmem:[#allocation8 + $0xa8] sm:$0xf]
    %v182 = vld [vmem:[#allocation8 + $0xac] sm:$0xf]
    %v183 = vld [vmem:[#allocation8 + $0xb0] sm:$0xf]
    %v184 = vld [vmem:[#allocation8 + $0xb4] sm:$0xf]
    %v185 = vld [vmem:[#allocation8 + $0xb8] sm:$0xf]
    %v186 = vld [vmem:[#allocation8 + $0xbc] sm:$0xf]
    %v187 = vld [vmem:[#allocation8 + $0xc0] sm:$0xf]
    %v188 = vld [vmem:[#allocation8 + $0xc4] sm:$0xf]
    %v189 = vld [vmem:[#allocation8 + $0xc8] sm:$0xf]
    %v190 = vld [vmem:[#allocation8 + $0xcc] sm:$0xf]
    %v191 = vld [vmem:[#allocation8 + $0xd0] sm:$0xf]
    %v192 = vld [vmem:[#allocation8 + $0xd4] sm:$0xf]
    %v193 = vld [vmem:[#allocation8 + $0xd8] sm:$0xf]
    %v194 = vld [vmem:[#allocation8 + $0xdc] sm:$0xf]
    %v195 = vld [vmem:[#allocation8 + $0xe0] sm:$0xf]
    %v196 = vld [vmem:[#allocation8 + $0xe4] sm:$0xf]
    %v197 = vld [vmem:[#allocation8 + $0xe8] sm:$0xf]
    %v198 = vld [vmem:[#allocation8 + $0xec] sm:$0xf]
    %v199 = vld [vmem:[#allocation8 + $0xf0] sm:$0xf]
    %v200 = vld [vmem:[#allocation8 + $0xf4] sm:$0xf]
    %v201 = vld [vmem:[#allocation8 + $0xf8] sm:$0xf]
    %v202 = vld [vmem:[#allocation8 + $0xfc] sm:$0xf]
    %v203 = vld [vmem:[#allocation8 + $0x100] sm:$0xf]
    %v204 = vld [vmem:[#allocation8 + $0x104] sm:$0xf]
    %v205 = vld [vmem:[#allocation8 + $0x108] sm:$0xf]
    %v206 = vld [vmem:[#allocation8 + $0x10c] sm:$0xf]
    %v207 = vld [vmem:[#allocation8 + $0x110] sm:$0xf]
    %v208 = vld [vmem:[#allocation8 + $0x114] sm:$0xf]
    %v209 = vld [vmem:[#allocation8 + $0x118] sm:$0xf]
    %v210 = vld [vmem:[#allocation8 + $0x11c] sm:$0xf]
    %v211 = vld [vmem:[#allocation8 + $0x120] sm:$0xf]
    %v212 = vld [vmem:[#allocation8 + $0x124] sm:$0xf]
    %v213 = vld [vmem:[#allocation8 + $0x128] sm:$0xf]
    %v214 = vld [vmem:[#allocation8 + $0x12c] sm:$0xf]
    %v215 = vld [vmem:[#allocation8 + $0x130] sm:$0xf]
    %v216 = vld [vmem:[#allocation8 + $0x134] sm:$0xf]
    %v217 = vld [vmem:[#allocation8 + $0x138] sm:$0xf]
    %v218 = vld [vmem:[#allocation8 + $0x13c] sm:$0xf]
    %v219 = vld [vmem:[#allocation8 + $0x140] sm:$0xf]
    %v220 = vld [vmem:[#allocation8 + $0x144] sm:$0xf]
    %v221 = vld [vmem:[#allocation8 + $0x148] sm:$0xf]
    %v222 = vld [vmem:[#allocation8 + $0x14c] sm:$0xf]
    %v223 = vld [vmem:[#allocation8 + $0x150] sm:$0xf]
    %v224 = vld [vmem:[#allocation8 + $0x154] sm:$0xf]
    %v225 = vld [vmem:[#allocation8 + $0x158] sm:$0xf]
    %v226 = vld [vmem:[#allocation8 + $0x15c] sm:$0xf]
    %v227 = vld [vmem:[#allocation8 + $0x160] sm:$0xf]
    %v228 = vld [vmem:[#allocation8 + $0x164] sm:$0xf]
    %v229 = vld [vmem:[#allocation8 + $0x168] sm:$0xf]
    %v230 = vld [vmem:[#allocation8 + $0x16c] sm:$0xf]
    %v231 = vld [vmem:[#allocation8 + $0x170] sm:$0xf]
    %v232 = vld [vmem:[#allocation8 + $0x174] sm:$0xf]
    %v233 = vld [vmem:[#allocation8 + $0x178] sm:$0xf]
    %v234 = vld [vmem:[#allocation8 + $0x17c] sm:$0xf]
    %v235 = vld [vmem:[#allocation8 + $0x180] sm:$0xf]
    %v236 = vld [vmem:[#allocation8 + $0x184] sm:$0xf]
    %v237 = vld [vmem:[#allocation8 + $0x188] sm:$0xf]
    %v238 = vld [vmem:[#allocation8 + $0x18c] sm:$0xf]
    %v239 = vld [vmem:[#allocation8 + $0x190] sm:$0xf]
    %v240 = vld [vmem:[#allocation8 + $0x194] sm:$0xf]
    %v241 = vld [vmem:[#allocation8 + $0x198] sm:$0xf]
    %v242 = vld [vmem:[#allocation8 + $0x19c] sm:$0xf]
    %v243 = vld [vmem:[#allocation8 + $0x1a0] sm:$0xf]
    %v244 = vld [vmem:[#allocation8 + $0x1a4] sm:$0xf]
    %v245 = vld [vmem:[#allocation8 + $0x1a8] sm:$0xf]
    %v246 = vld [vmem:[#allocation8 + $0x1ac] sm:$0xf]
    %v247 = vld [vmem:[#allocation8 + $0x1b0] sm:$0xf]
    %v248 = vld [vmem:[#allocation8 + $0x1b4] sm:$0xf]
    %v249 = vld [vmem:[#allocation8 + $0x1b8] sm:$0xf]
    %v250 = vld [vmem:[#allocation8 + $0x1bc] sm:$0xf]
    %v251 = vld [vmem:[#allocation8 + $0x1c0] sm:$0xf]
    %v252 = vld [vmem:[#allocation8 + $0x1c4] sm:$0xf]
    %v253 = vld [vmem:[#allocation8 + $0x1c8] sm:$0xf]
    %v254 = vld [vmem:[#allocation8 + $0x1cc] sm:$0xf]
    %v255 = vld [vmem:[#allocation8 + $0x1d0] sm:$0xf]
    %v256 = vld [vmem:[#allocation8 + $0x1d4] sm:$0xf]
    %v257 = vld [vmem:[#allocation8 + $0x1d8] sm:$0xf]
    %v258 = vld [vmem:[#allocation8 + $0x1dc] sm:$0xf]
    %v259 = vld [vmem:[#allocation8 + $0x1e0] sm:$0xf]
    %v260 = vld [vmem:[#allocation8 + $0x1e4] sm:$0xf]
    %v261 = vld [vmem:[#allocation8 + $0x1e8] sm:$0xf]
    %v262 = vld [vmem:[#allocation8 + $0x1ec] sm:$0xf]
    %v263 = vld [vmem:[#allocation8 + $0x1f0] sm:$0xf]
    %v264 = vld [vmem:[#allocation8 + $0x1f4] sm:$0xf]
    %v265 = vld [vmem:[#allocation8 + $0x1f8] sm:$0xf]
    %v266 = vld [vmem:[#allocation8 + $0x1fc] sm:$0xf]
    %v275 = vunpack.c.l.b16 %v131
    %v276 = vunpack.c.h.b16 %v131
    %v277 = vunpack.c.l.b16 %v132
    %v278 = vunpack.c.h.b16 %v132
    %v279 = vunpack.c.l.b16 %v133
    %v280 = vunpack.c.h.b16 %v133
    %v281 = vunpack.c.l.b16 %v134
    %v282 = vunpack.c.h.b16 %v134
    %v283 = vunpack.c.l.b16 %v135
    %v284 = vunpack.c.h.b16 %v135
    %v285 = vunpack.c.l.b16 %v136
    %v286 = vunpack.c.h.b16 %v136
    %v287 = vunpack.c.l.b16 %v137
    %v288 = vunpack.c.h.b16 %v137
    %v289 = vunpack.c.l.b16 %v138
    %v290 = vunpack.c.h.b16 %v138
    %v291 = vpack.c.b16 %v283, %v275
    %v292 = vpack.c.b16 %v284, %v276
    %v293 = vpack.c.b16 %v285, %v277
    %v294 = vpack.c.b16 %v286, %v278
    %v295 = vpack.c.b16 %v287, %v279
    %v296 = vpack.c.b16 %v288, %v280
    %v297 = vpack.c.b16 %v289, %v281
    %v298 = vpack.c.b16 %v290, %v282
    %v435 = vunpack.c.l.b16 %v139
    %v436 = vunpack.c.l.b16 %v140
    %v437 = vunpack.c.l.b16 %v141
    %v438 = vunpack.c.l.b16 %v142
    %v439 = vunpack.c.l.b16 %v143
    %v440 = vunpack.c.l.b16 %v144
    %v441 = vunpack.c.l.b16 %v145
    %v442 = vunpack.c.l.b16 %v146
    %v443 = vunpack.c.l.b16 %v147
    %v444 = vunpack.c.l.b16 %v148
    %v445 = vunpack.c.l.b16 %v149
    %v446 = vunpack.c.l.b16 %v150
    %v447 = vunpack.c.l.b16 %v151
    %v448 = vunpack.c.l.b16 %v152
    %v449 = vunpack.c.l.b16 %v153
    %v450 = vunpack.c.l.b16 %v154
    %v451 = vunpack.c.l.b16 %v155
    %v452 = vunpack.c.l.b16 %v156
    %v453 = vunpack.c.l.b16 %v157
    %v454 = vunpack.c.l.b16 %v158
    %v455 = vunpack.c.l.b16 %v159
    %v456 = vunpack.c.l.b16 %v160
    %v457 = vunpack.c.l.b16 %v161
    %v458 = vunpack.c.l.b16 %v162
    %v459 = vunpack.c.l.b16 %v163
    %v460 = vunpack.c.l.b16 %v164
    %v461 = vunpack.c.l.b16 %v165
    %v462 = vunpack.c.l.b16 %v166
    %v463 = vunpack.c.l.b16 %v167
    %v464 = vunpack.c.l.b16 %v168
    %v465 = vunpack.c.l.b16 %v169
    %v466 = vunpack.c.l.b16 %v170
    %v467 = vunpack.c.l.b16 %v171
    %v468 = vunpack.c.l.b16 %v172
    %v469 = vunpack.c.l.b16 %v173
    %v470 = vunpack.c.l.b16 %v174
    %v471 = vunpack.c.l.b16 %v175
    %v472 = vunpack.c.l.b16 %v176
    %v473 = vunpack.c.l.b16 %v177
    %v474 = vunpack.c.l.b16 %v178
    %v475 = vunpack.c.l.b16 %v179
    %v476 = vunpack.c.l.b16 %v180
    %v477 = vunpack.c.l.b16 %v181
    %v478 = vunpack.c.l.b16 %v182
    %v479 = vunpack.c.l.b16 %v183
    %v480 = vunpack.c.l.b16 %v184
    %v481 = vunpack.c.l.b16 %v185
    %v482 = vunpack.c.l.b16 %v186
    %v483 = vunpack.c.l.b16 %v187
    %v484 = vunpack.c.l.b16 %v188
    %v485 = vunpack.c.l.b16 %v189
    %v486 = vunpack.c.l.b16 %v190
    %v487 = vunpack.c.l.b16 %v191
    %v488 = vunpack.c.l.b16 %v192
    %v489 = vunpack.c.l.b16 %v193
    %v490 = vunpack.c.l.b16 %v194
    %v491 = vunpack.c.l.b16 %v195
    %v492 = vunpack.c.l.b16 %v196
    %v493 = vunpack.c.l.b16 %v197
    %v494 = vunpack.c.l.b16 %v198
    %v495 = vunpack.c.l.b16 %v199
    %v496 = vunpack.c.l.b16 %v200
    %v497 = vunpack.c.l.b16 %v201
    %v498 = vunpack.c.l.b16 %v202
    %v499 = vunpack.c.l.b16 %v203
    %v500 = vunpack.c.l.b16 %v204
    %v501 = vunpack.c.l.b16 %v205
    %v502 = vunpack.c.l.b16 %v206
    %v503 = vunpack.c.l.b16 %v207
    %v504 = vunpack.c.l.b16 %v208
    %v505 = vunpack.c.l.b16 %v209
    %v506 = vunpack.c.l.b16 %v210
    %v507 = vunpack.c.l.b16 %v211
    %v508 = vunpack.c.l.b16 %v212
    %v509 = vunpack.c.l.b16 %v213
    %v510 = vunpack.c.l.b16 %v214
    %v511 = vunpack.c.l.b16 %v215
    %v512 = vunpack.c.l.b16 %v216
    %v513 = vunpack.c.l.b16 %v217
    %v514 = vunpack.c.l.b16 %v218
    %v515 = vunpack.c.l.b16 %v219
    %v516 = vunpack.c.l.b16 %v220
    %v517 = vunpack.c.l.b16 %v221
    %v518 = vunpack.c.l.b16 %v222
    %v519 = vunpack.c.l.b16 %v223
    %v520 = vunpack.c.l.b16 %v224
    %v521 = vunpack.c.l.b16 %v225
    %v522 = vunpack.c.l.b16 %v226
    %v523 = vunpack.c.l.b16 %v227
    %v524 = vunpack.c.l.b16 %v228
    %v525 = vunpack.c.l.b16 %v229
    %v526 = vunpack.c.l.b16 %v230
    %v527 = vunpack.c.l.b16 %v231
    %v528 = vunpack.c.l.b16 %v232
    %v529 = vunpack.c.l.b16 %v233
    %v530 = vunpack.c.l.b16 %v234
    %v531 = vunpack.c.l.b16 %v235
    %v532 = vunpack.c.l.b16 %v236
    %v533 = vunpack.c.l.b16 %v237
    %v534 = vunpack.c.l.b16 %v238
    %v535 = vunpack.c.l.b16 %v239
    %v536 = vunpack.c.l.b16 %v240
    %v537 = vunpack.c.l.b16 %v241
    %v538 = vunpack.c.l.b16 %v242
    %v539 = vunpack.c.l.b16 %v243
    %v540 = vunpack.c.l.b16 %v244
    %v541 = vunpack.c.l.b16 %v245
    %v542 = vunpack.c.l.b16 %v246
    %v543 = vunpack.c.l.b16 %v247
    %v544 = vunpack.c.l.b16 %v248
    %v545 = vunpack.c.l.b16 %v249
    %v546 = vunpack.c.l.b16 %v250
    %v547 = vunpack.c.l.b16 %v251
    %v548 = vunpack.c.l.b16 %v252
    %v549 = vunpack.c.l.b16 %v253
    %v550 = vunpack.c.l.b16 %v254
    %v551 = vunpack.c.l.b16 %v255
    %v552 = vunpack.c.l.b16 %v256
    %v553 = vunpack.c.l.b16 %v257
    %v554 = vunpack.c.l.b16 %v258
    %v555 = vunpack.c.l.b16 %v259
    %v556 = vunpack.c.l.b16 %v260
    %v557 = vunpack.c.l.b16 %v261
    %v558 = vunpack.c.l.b16 %v262
    %v559 = vunpack.c.l.b16 %v263
    %v560 = vunpack.c.l.b16 %v264
    %v561 = vunpack.c.l.b16 %v265
    %v562 = vunpack.c.l.b16 %v266
    %v563 = vpack.c.b16 %v436, %v435
    %v564 = vpack.c.b16 %v438, %v437
    %v565 = vpack.c.b16 %v440, %v439
    %v566 = vpack.c.b16 %v442, %v441
    %v567 = vpack.c.b16 %v444, %v443
    %v568 = vpack.c.b16 %v446, %v445
    %v569 = vpack.c.b16 %v448, %v447
    %v570 = vpack.c.b16 %v450, %v449
    %v571 = vpack.c.b16 %v452, %v451
    %v572 = vpack.c.b16 %v454, %v453
    %v573 = vpack.c.b16 %v456, %v455
    %v574 = vpack.c.b16 %v458, %v457
    %v575 = vpack.c.b16 %v460, %v459
    %v576 = vpack.c.b16 %v462, %v461
    %v577 = vpack.c.b16 %v464, %v463
    %v578 = vpack.c.b16 %v466, %v465
    %v579 = vpack.c.b16 %v468, %v467
    %v580 = vpack.c.b16 %v470, %v469
    %v581 = vpack.c.b16 %v472, %v471
    %v582 = vpack.c.b16 %v474, %v473
    %v583 = vpack.c.b16 %v476, %v475
    %v584 = vpack.c.b16 %v478, %v477
    %v585 = vpack.c.b16 %v480, %v479
    %v586 = vpack.c.b16 %v482, %v481
    %v587 = vpack.c.b16 %v484, %v483
    %v588 = vpack.c.b16 %v486, %v485
    %v589 = vpack.c.b16 %v488, %v487
    %v590 = vpack.c.b16 %v490, %v489
    %v591 = vpack.c.b16 %v492, %v491
    %v592 = vpack.c.b16 %v494, %v493
    %v593 = vpack.c.b16 %v496, %v495
    %v594 = vpack.c.b16 %v498, %v497
    %v595 = vpack.c.b16 %v500, %v499
    %v596 = vpack.c.b16 %v502, %v501
    %v597 = vpack.c.b16 %v504, %v503
    %v598 = vpack.c.b16 %v506, %v505
    %v599 = vpack.c.b16 %v508, %v507
    %v600 = vpack.c.b16 %v510, %v509
    %v601 = vpack.c.b16 %v512, %v511
    %v602 = vpack.c.b16 %v514, %v513
    %v603 = vpack.c.b16 %v516, %v515
    %v604 = vpack.c.b16 %v518, %v517
    %v605 = vpack.c.b16 %v520, %v519
    %v606 = vpack.c.b16 %v522, %v521
    %v607 = vpack.c.b16 %v524, %v523
    %v608 = vpack.c.b16 %v526, %v525
    %v609 = vpack.c.b16 %v528, %v527
    %v610 = vpack.c.b16 %v530, %v529
    %v611 = vpack.c.b16 %v532, %v531
    %v612 = vpack.c.b16 %v534, %v533
    %v613 = vpack.c.b16 %v536, %v535
    %v614 = vpack.c.b16 %v538, %v537
    %v615 = vpack.c.b16 %v540, %v539
    %v616 = vpack.c.b16 %v542, %v541
    %v617 = vpack.c.b16 %v544, %v543
    %v618 = vpack.c.b16 %v546, %v545
    %v619 = vpack.c.b16 %v548, %v547
    %v620 = vpack.c.b16 %v550, %v549
    %v621 = vpack.c.b16 %v552, %v551
    %v622 = vpack.c.b16 %v554, %v553
    %v623 = vpack.c.b16 %v556, %v555
    %v624 = vpack.c.b16 %v558, %v557
    %v625 = vpack.c.b16 %v560, %v559
    %v626 = vpack.c.b16 %v562, %v561
    %691 = vmatpush.bf16.msra.mxu0 %v570
    %692 = vmatpush.bf16.msra.mxu0 %v569
    %693 = vmatpush.bf16.msra.mxu0 %v568
    %694 = vmatpush.bf16.msra.mxu0 %v567
    %695 = vmatpush.bf16.msra.mxu0 %v566
    %696 = vmatpush.bf16.msra.mxu0 %v565
    %697 = vmatpush.bf16.msra.mxu0 %v564
    %698 = vmatpush.bf16.msra.mxu0 %v563
    %699 = vmatmul.bf16.gmra.mxu0 %v291
    %v700 = vpop.f32.mrf.mxu0
    %v701 = vadd.f32 0.0, %v700
    %v702 = vpop.f32.mrf.mxu0
    %v703 = vadd.f32 0.0, %v702
    %704 = vdwg.mxu0
    %705 = vmatpush.bf16.msra.mxu0 %v578
    %706 = vmatpush.bf16.msra.mxu0 %v577
    %707 = vmatpush.bf16.msra.mxu0 %v576
    %708 = vmatpush.bf16.msra.mxu0 %v575
    %709 = vmatpush.bf16.msra.mxu0 %v574
    %710 = vmatpush.bf16.msra.mxu0 %v573
    %711 = vmatpush.bf16.msra.mxu0 %v572
    %712 = vmatpush.bf16.msra.mxu0 %v571
    %713 = vmatmul.bf16.gmra.mxu0 %v292
    %v714 = vpop.f32.mrf.mxu0
    %v715 = vadd.f32 %v701, %v714
    %v716 = vpop.f32.mrf.mxu0
    %v717 = vadd.f32 %v703, %v716
    %718 = vdwg.mxu0
    %719 = vmatpush.bf16.msra.mxu0 %v586
    %720 = vmatpush.bf16.msra.mxu0 %v585
    %721 = vmatpush.bf16.msra.mxu0 %v584
    %722 = vmatpush.bf16.msra.mxu0 %v583
    %723 = vmatpush.bf16.msra.mxu0 %v582
    %724 = vmatpush.bf16.msra.mxu0 %v581
    %725 = vmatpush.bf16.msra.mxu0 %v580
    %726 = vmatpush.bf16.msra.mxu0 %v579
    %727 = vmatmul.bf16.gmra.mxu0 %v293
    %v728 = vpop.f32.mrf.mxu0
    %v729 = vadd.f32 %v715, %v728
    %v730 = vpop.f32.mrf.mxu0
    %v731 = vadd.f32 %v717, %v730
    %732 = vdwg.mxu0
    %733 = vmatpush.bf16.msra.mxu0 %v594
    %734 = vmatpush.bf16.msra.mxu0 %v593
    %735 = vmatpush.bf16.msra.mxu0 %v592
    %736 = vmatpush.bf16.msra.mxu0 %v591
    %737 = vmatpush.bf16.msra.mxu0 %v590
    %738 = vmatpush.bf16.msra.mxu0 %v589
    %739 = vmatpush.bf16.msra.mxu0 %v588
    %740 = vmatpush.bf16.msra.mxu0 %v587
    %741 = vmatmul.bf16.gmra.mxu0 %v294
    %v742 = vpop.f32.mrf.mxu0
    %v743 = vadd.f32 %v729, %v742
    %v744 = vpop.f32.mrf.mxu0
    %v745 = vadd.f32 %v731, %v744
    %746 = vdwg.mxu0
    %747 = vmatpush.bf16.msra.mxu0 %v602
    %748 = vmatpush.bf16.msra.mxu0 %v601
    %749 = vmatpush.bf16.msra.mxu0 %v600
    %750 = vmatpush.bf16.msra.mxu0 %v599
    %751 = vmatpush.bf16.msra.mxu0 %v598
    %752 = vmatpush.bf16.msra.mxu0 %v597
    %753 = vmatpush.bf16.msra.mxu0 %v596
    %754 = vmatpush.bf16.msra.mxu0 %v595
    %755 = vmatmul.bf16.gmra.mxu0 %v295
    %v756 = vpop.f32.mrf.mxu0
    %v757 = vadd.f32 %v743, %v756
    %v758 = vpop.f32.mrf.mxu0
    %v759 = vadd.f32 %v745, %v758
    %760 = vdwg.mxu0
    %761 = vmatpush.bf16.msra.mxu0 %v610
    %762 = vmatpush.bf16.msra.mxu0 %v609
    %763 = vmatpush.bf16.msra.mxu0 %v608
    %764 = vmatpush.bf16.msra.mxu0 %v607
    %765 = vmatpush.bf16.msra.mxu0 %v606
    %766 = vmatpush.bf16.msra.mxu0 %v605
    %767 = vmatpush.bf16.msra.mxu0 %v604
    %768 = vmatpush.bf16.msra.mxu0 %v603
    %769 = vmatmul.bf16.gmra.mxu0 %v296
    %v770 = vpop.f32.mrf.mxu0
    %v771 = vadd.f32 %v757, %v770
    %v772 = vpop.f32.mrf.mxu0
    %v773 = vadd.f32 %v759, %v772
    %774 = vdwg.mxu0
    %775 = vmatpush.bf16.msra.mxu0 %v618
    %776 = vmatpush.bf16.msra.mxu0 %v617
    %777 = vmatpush.bf16.msra.mxu0 %v616
    %778 = vmatpush.bf16.msra.mxu0 %v615
    %779 = vmatpush.bf16.msra.mxu0 %v614
    %780 = vmatpush.bf16.msra.mxu0 %v613
    %781 = vmatpush.bf16.msra.mxu0 %v612
    %782 = vmatpush.bf16.msra.mxu0 %v611
    %783 = vmatmul.bf16.gmra.mxu0 %v297
    %v784 = vpop.f32.mrf.mxu0
    %v785 = vadd.f32 %v771, %v784
    %v786 = vpop.f32.mrf.mxu0
    %v787 = vadd.f32 %v773, %v786
    %788 = vdwg.mxu0
    %789 = vmatpush.bf16.msra.mxu0 %v626
    %790 = vmatpush.bf16.msra.mxu0 %v625
    %791 = vmatpush.bf16.msra.mxu0 %v624
    %792 = vmatpush.bf16.msra.mxu0 %v623
    %793 = vmatpush.bf16.msra.mxu0 %v622
    %794 = vmatpush.bf16.msra.mxu0 %v621
    %795 = vmatpush.bf16.msra.mxu0 %v620
    %796 = vmatpush.bf16.msra.mxu0 %v619
    %797 = vmatmul.bf16.gmra.mxu0 %v298
    %v798 = vpop.f32.mrf.mxu0
    %v799 = vadd.f32 %v785, %v798
    %v800 = vpop.f32.mrf.mxu0
    %v801 = vadd.f32 %v787, %v800
    %802 = vdwg.mxu0
    %v803 = vadd.f32 %v129, %v799
    %v804 = vadd.f32 %v130, %v801
    %805 = vst [vmem:[#allocation2] sm:$0xff] %v803
    %806 = vst [vmem:[#allocation2 + $0x8] sm:$0xff] %v804
    // Predicated region
    $region70: #{tpu_custom_call.1} parent=1 // pred_check
      %p807 = pneg %p123
    $region71: #{tpu_custom_call.1} parent=1 // pred_check_branch
      %809 = sbr.rel (%p807) target = $region73
    $region72: #{tpu_custom_call.1} parent=1 // pred_region
      %v810 = vld [vmem:[#allocation2] sm:$0xff]
      %v811 = vld [vmem:[#allocation2 + $0x8] sm:$0xff]
      %v812 = vld [vmem:[#allocation10] sm:$0x1]
      %v814 = vperm.slane %v812, 0
      %v816 = vadd.f32 %v810, %v814
      %v817 = vadd.f32 %v811, %v814
      %v818 = vmax.f32 %v816, 0.0
      %v819 = vmax.f32 %v817, 0.0
      %v820 = vpack.c.bf16 %v819, %v818
      %v821 = vld [vmem:[#allocation11] sm:$0xff]
      %v822 = vld [vmem:[#allocation11 + $0x8] sm:$0xff]
      %v823 = vld [vmem:[#allocation11 + $0x10] sm:$0xf]
      %v824 = vld [vmem:[#allocation11 + $0x14] sm:$0xff]
      %v825 = vld [vmem:[#allocation11 + $0x1c] sm:$0xff]
      %v826 = vld [vmem:[#allocation11 + $0x24] sm:$0xf]
      %v827 = vld [vmem:[#allocation11 + $0x28] sm:$0xff]
      %v828 = vld [vmem:[#allocation11 + $0x30] sm:$0xff]
      %v829 = vld [vmem:[#allocation11 + $0x38] sm:$0xf]
      %v830 = vld [vmem:[#allocation11 + $0x3c] sm:$0xff]
      %v831 = vld [vmem:[#allocation11 + $0x44] sm:$0xff]
      %v832 = vld [vmem:[#allocation11 + $0x4c] sm:$0xf]
      %v833 = vld [vmem:[#allocation11 + $0x50] sm:$0xff]
      %v834 = vld [vmem:[#allocation11 + $0x58] sm:$0xff]
      %v835 = vld [vmem:[#allocation11 + $0x60] sm:$0xf]
      %v836 = vld [vmem:[#allocation11 + $0x64] sm:$0xff]
      %v837 = vld [vmem:[#allocation11 + $0x6c] sm:$0xff]
      %v838 = vld [vmem:[#allocation11 + $0x74] sm:$0xf]
      %v839 = vld [vmem:[#allocation11 + $0x78] sm:$0xff]
      %v840 = vld [vmem:[#allocation11 + $0x80] sm:$0xff]
      %v841 = vld [vmem:[#allocation11 + $0x88] sm:$0xf]
      %v842 = vld [vmem:[#allocation11 + $0x8c] sm:$0xff]
      %v843 = vld [vmem:[#allocation11 + $0x94] sm:$0xff]
      %v844 = vld [vmem:[#allocation11 + $0x9c] sm:$0xf]
      %v845 = vld [vmem:[#allocation11 + $0xa0] sm:$0xff]
      %v846 = vld [vmem:[#allocation11 + $0xa8] sm:$0xff]
      %v847 = vld [vmem:[#allocation11 + $0xb0] sm:$0xf]
      %v848 = vld [vmem:[#allocation11 + $0xb4] sm:$0xff]
      %v849 = vld [vmem:[#allocation11 + $0xbc] sm:$0xff]
      %v850 = vld [vmem:[#allocation11 + $0xc4] sm:$0xf]
      %v851 = vld [vmem:[#allocation11 + $0xc8] sm:$0xff]
      %v852 = vld [vmem:[#allocation11 + $0xd0] sm:$0xff]
      %v853 = vld [vmem:[#allocation11 + $0xd8] sm:$0xf]
      %v854 = vld [vmem:[#allocation11 + $0xdc] sm:$0xff]
      %v855 = vld [vmem:[#allocation11 + $0xe4] sm:$0xff]
      %v856 = vld [vmem:[#allocation11 + $0xec] sm:$0xf]
      %v857 = vld [vmem:[#allocation11 + $0xf0] sm:$0xff]
      %v858 = vld [vmem:[#allocation11 + $0xf8] sm:$0xff]
      %v859 = vld [vmem:[#allocation11 + $0x100] sm:$0xf]
      %v860 = vld [vmem:[#allocation11 + $0x104] sm:$0xff]
      %v861 = vld [vmem:[#allocation11 + $0x10c] sm:$0xff]
      %v862 = vld [vmem:[#allocation11 + $0x114] sm:$0xf]
      %v863 = vld [vmem:[#allocation11 + $0x118] sm:$0xff]
      %v864 = vld [vmem:[#allocation11 + $0x120] sm:$0xff]
      %v865 = vld [vmem:[#allocation11 + $0x128] sm:$0xf]
      %v866 = vld [vmem:[#allocation11 + $0x12c] sm:$0xff]
      %v867 = vld [vmem:[#allocation11 + $0x134] sm:$0xff]
      %v868 = vld [vmem:[#allocation11 + $0x13c] sm:$0xf]
      %v869 = vld [vmem:[%s4] sm:$0x1f]
      %v871 = vperm.slane %v869, 0
      %v872 = vperm.slane %v869, 1
      %v873 = vperm.slane %v869, 2
      %v874 = vperm.slane %v869, 3
      %v875 = vperm.slane %v869, 4
      %v929 = vunpack.c.l.b16 %v821
      %v930 = vunpack.c.h.b16 %v821
      %v931 = vunpack.c.l.b16 %v822
      %v932 = vunpack.c.h.b16 %v822
      %v933 = vunpack.c.l.b16 %v823
      %v934 = vunpack.c.l.b16 %v824
      %v935 = vunpack.c.h.b16 %v824
      %v936 = vunpack.c.l.b16 %v825
      %v937 = vunpack.c.h.b16 %v825
      %v938 = vunpack.c.l.b16 %v826
      %v939 = vunpack.c.l.b16 %v827
      %v940 = vunpack.c.h.b16 %v827
      %v941 = vunpack.c.l.b16 %v828
      %v942 = vunpack.c.h.b16 %v828
      %v943 = vunpack.c.l.b16 %v829
      %v944 = vunpack.c.l.b16 %v830
      %v945 = vunpack.c.h.b16 %v830
      %v946 = vunpack.c.l.b16 %v831
      %v947 = vunpack.c.h.b16 %v831
      %v948 = vunpack.c.l.b16 %v832
      %v949 = vunpack.c.l.b16 %v833
      %v950 = vunpack.c.h.b16 %v833
      %v951 = vunpack.c.l.b16 %v834
      %v952 = vunpack.c.h.b16 %v834
      %v953 = vunpack.c.l.b16 %v835
      %v954 = vunpack.c.l.b16 %v836
      %v955 = vunpack.c.h.b16 %v836
      %v956 = vunpack.c.l.b16 %v837
      %v957 = vunpack.c.h.b16 %v837
      %v958 = vunpack.c.l.b16 %v838
      %v959 = vunpack.c.l.b16 %v839
      %v960 = vunpack.c.h.b16 %v839
      %v961 = vunpack.c.l.b16 %v840
      %v962 = vunpack.c.h.b16 %v840
      %v963 = vunpack.c.l.b16 %v841
      %v964 = vunpack.c.l.b16 %v842
      %v965 = vunpack.c.h.b16 %v842
      %v966 = vunpack.c.l.b16 %v843
      %v967 = vunpack.c.h.b16 %v843
      %v968 = vunpack.c.l.b16 %v844
      %v969 = vunpack.c.l.b16 %v845
      %v970 = vunpack.c.h.b16 %v845
      %v971 = vunpack.c.l.b16 %v846
      %v972 = vunpack.c.h.b16 %v846
      %v973 = vunpack.c.l.b16 %v847
      %v974 = vunpack.c.l.b16 %v848
      %v975 = vunpack.c.h.b16 %v848
      %v976 = vunpack.c.l.b16 %v849
      %v977 = vunpack.c.h.b16 %v849
      %v978 = vunpack.c.l.b16 %v850
      %v979 = vunpack.c.l.b16 %v851
      %v980 = vunpack.c.h.b16 %v851
      %v981 = vunpack.c.l.b16 %v852
      %v982 = vunpack.c.h.b16 %v852
      %v983 = vunpack.c.l.b16 %v853
      %v984 = vunpack.c.l.b16 %v854
      %v985 = vunpack.c.h.b16 %v854
      %v986 = vunpack.c.l.b16 %v855
      %v987 = vunpack.c.h.b16 %v855
      %v988 = vunpack.c.l.b16 %v856
      %v989 = vunpack.c.l.b16 %v857
      %v990 = vunpack.c.h.b16 %v857
      %v991 = vunpack.c.l.b16 %v858
      %v992 = vunpack.c.h.b16 %v858
      %v993 = vunpack.c.l.b16 %v859
      %v994 = vunpack.c.l.b16 %v860
      %v995 = vunpack.c.h.b16 %v860
      %v996 = vunpack.c.l.b16 %v861
      %v997 = vunpack.c.h.b16 %v861
      %v998 = vunpack.c.l.b16 %v862
      %v999 = vunpack.c.l.b16 %v863
      %v1000 = vunpack.c.h.b16 %v863
      %v1001 = vunpack.c.l.b16 %v864
      %v1002 = vunpack.c.h.b16 %v864
      %v1003 = vunpack.c.l.b16 %v865
      %v1004 = vunpack.c.l.b16 %v866
      %v1005 = vunpack.c.h.b16 %v866
      %v1006 = vunpack.c.l.b16 %v867
      %v1007 = vunpack.c.h.b16 %v867
      %v1008 = vunpack.c.l.b16 %v868
      %v1009 = vpack.c.b16 %v934, %v929
      %v1010 = vpack.c.b16 %v935, %v930
      %v1011 = vpack.c.b16 %v936, %v931
      %v1012 = vpack.c.b16 %v937, %v932
      %v1013 = vpack.c.b16 %v938, %v933
      %v1014 = vpack.c.b16 %v944, %v939
      %v1015 = vpack.c.b16 %v945, %v940
      %v1016 = vpack.c.b16 %v946, %v941
      %v1017 = vpack.c.b16 %v947, %v942
      %v1018 = vpack.c.b16 %v948, %v943
      %v1019 = vpack.c.b16 %v954, %v949
      %v1020 = vpack.c.b16 %v955, %v950
      %v1021 = vpack.c.b16 %v956, %v951
      %v1022 = vpack.c.b16 %v957, %v952
      %v1023 = vpack.c.b16 %v958, %v953
      %v1024 = vpack.c.b16 %v964, %v959
      %v1025 = vpack.c.b16 %v965, %v960
      %v1026 = vpack.c.b16 %v966, %v961
      %v1027 = vpack.c.b16 %v967, %v962
      %v1028 = vpack.c.b16 %v968, %v963
      %v1029 = vpack.c.b16 %v974, %v969
      %v1030 = vpack.c.b16 %v975, %v970
      %v1031 = vpack.c.b16 %v976, %v971
      %v1032 = vpack.c.b16 %v977, %v972
      %v1033 = vpack.c.b16 %v978, %v973
      %v1034 = vpack.c.b16 %v984, %v979
      %v1035 = vpack.c.b16 %v985, %v980
      %v1036 = vpack.c.b16 %v986, %v981
      %v1037 = vpack.c.b16 %v987, %v982
      %v1038 = vpack.c.b16 %v988, %v983
      %v1039 = vpack.c.b16 %v994, %v989
      %v1040 = vpack.c.b16 %v995, %v990
      %v1041 = vpack.c.b16 %v996, %v991
      %v1042 = vpack.c.b16 %v997, %v992
      %v1043 = vpack.c.b16 %v998, %v993
      %v1044 = vpack.c.b16 %v1004, %v999
      %v1045 = vpack.c.b16 %v1005, %v1000
      %v1046 = vpack.c.b16 %v1006, %v1001
      %v1047 = vpack.c.b16 %v1007, %v1002
      %v1048 = vpack.c.b16 %v1008, %v1003
      %1089 = vmatpush.bf16.msra.mxu0 %v1044
      %1090 = vmatpush.bf16.msra.mxu0 %v1039
      %1091 = vmatpush.bf16.msra.mxu0 %v1034
      %1092 = vmatpush.bf16.msra.mxu0 %v1029
      %1093 = vmatpush.bf16.msra.mxu0 %v1024
      %1094 = vmatpush.bf16.msra.mxu0 %v1019
      %1095 = vmatpush.bf16.msra.mxu0 %v1014
      %1096 = vmatpush.bf16.msra.mxu0 %v1009
      %1097 = vmatmul.bf16.gmra.mxu0 %v820
      %v1098 = vpop.f32.mrf.mxu0
      %v1099 = vadd.f32 %v871, %v1098
      %v1100 = vpop.f32.mrf.mxu0
      %v1101 = vadd.f32 %v871, %v1100
      %1102 = vdwg.mxu0
      %1103 = vmatpush.bf16.msra.mxu0 %v1045
      %1104 = vmatpush.bf16.msra.mxu0 %v1040
      %1105 = vmatpush.bf16.msra.mxu0 %v1035
      %1106 = vmatpush.bf16.msra.mxu0 %v1030
      %1107 = vmatpush.bf16.msra.mxu0 %v1025
      %1108 = vmatpush.bf16.msra.mxu0 %v1020
      %1109 = vmatpush.bf16.msra.mxu0 %v1015
      %1110 = vmatpush.bf16.msra.mxu0 %v1010
      %1111 = vmatmul.bf16.gmra.mxu0 %v820
      %v1112 = vpop.f32.mrf.mxu0
      %v1113 = vadd.f32 %v872, %v1112
      %v1114 = vpop.f32.mrf.mxu0
      %v1115 = vadd.f32 %v872, %v1114
      %1116 = vdwg.mxu0
      %1117 = vmatpush.bf16.msra.mxu0 %v1046
      %1118 = vmatpush.bf16.msra.mxu0 %v1041
      %1119 = vmatpush.bf16.msra.mxu0 %v1036
      %1120 = vmatpush.bf16.msra.mxu0 %v1031
      %1121 = vmatpush.bf16.msra.mxu0 %v1026
      %1122 = vmatpush.bf16.msra.mxu0 %v1021
      %1123 = vmatpush.bf16.msra.mxu0 %v1016
      %1124 = vmatpush.bf16.msra.mxu0 %v1011
      %1125 = vmatmul.bf16.gmra.mxu0 %v820
      %v1126 = vpop.f32.mrf.mxu0
      %v1127 = vadd.f32 %v873, %v1126
      %v1128 = vpop.f32.mrf.mxu0
      %v1129 = vadd.f32 %v873, %v1128
      %1130 = vdwg.mxu0
      %1131 = vmatpush.bf16.msra.mxu0 %v1047
      %1132 = vmatpush.bf16.msra.mxu0 %v1042
      %1133 = vmatpush.bf16.msra.mxu0 %v1037
      %1134 = vmatpush.bf16.msra.mxu0 %v1032
      %1135 = vmatpush.bf16.msra.mxu0 %v1027
      %1136 = vmatpush.bf16.msra.mxu0 %v1022
      %1137 = vmatpush.bf16.msra.mxu0 %v1017
      %1138 = vmatpush.bf16.msra.mxu0 %v1012
      %1139 = vmatmul.bf16.gmra.mxu0 %v820
      %v1140 = vpop.f32.mrf.mxu0
      %v1141 = vadd.f32 %v874, %v1140
      %v1142 = vpop.f32.mrf.mxu0
      %v1143 = vadd.f32 %v874, %v1142
      %1144 = vdwg.mxu0
      %1145 = vmatpush.bf16.msra.mxu0 %v1048
      %1146 = vmatpush.bf16.msra.mxu0 %v1043
      %1147 = vmatpush.bf16.msra.mxu0 %v1038
      %1148 = vmatpush.bf16.msra.mxu0 %v1033
      %1149 = vmatpush.bf16.msra.mxu0 %v1028
      %1150 = vmatpush.bf16.msra.mxu0 %v1023
      %1151 = vmatpush.bf16.msra.mxu0 %v1018
      %1152 = vmatpush.bf16.msra.mxu0 %v1013
      %1153 = vmatmul.bf16.gmra.mxu0 %v820
      %v1154 = vpop.f32.mrf.mxu0
      %v1155 = vadd.f32 %v875, %v1154
      %v1156 = vpop.f32.mrf.mxu0
      %v1157 = vadd.f32 %v875, %v1156
      %1158 = vdwg.mxu0
      %v1159 = vtanh.pop %v1099
      %v1160 = vtanh.pop %v1113
      %v1161 = vtanh.pop %v1101
      %v1162 = vtanh.pop %v1115
      %v1163 = vxor.u32 %v1127, 2147483648
      %v1164 = vxor.u32 %v1141, 2147483648
      %v1165 = vxor.u32 %v1129, 2147483648
      %v1166 = vxor.u32 %v1143, 2147483648
      %v1167 = vmul.f32 %v1163, 1.442695
      %v1168 = vpow.pop %v1167
      %v1169 = vmul.f32 %v1164, 1.442695
      %v1170 = vpow.pop %v1169
      %v1171 = vmul.f32 %v1165, 1.442695
      %v1172 = vpow.pop %v1171
      %v1173 = vmul.f32 %v1166, 1.442695
      %v1174 = vpow.pop %v1173
      %v1175 = vadd.f32 %v1168, 1.0
      %v1176 = vadd.f32 %v1170, 1.0
      %v1177 = vadd.f32 %v1172, 1.0
      %v1178 = vadd.f32 %v1174, 1.0
      %v1179 = vrcp.pop %v1175
      %v1180 = vmul.f32 %v1175, %v1179
      %v1181 = vsub.f32 1.0, %v1180
      %v1182 = vmul.f32 %v1179, %v1181
      %v1183 = vadd.f32 %v1179, %v1182
      %vm1184 = vweird.f32 %v1175
      %vm1185 = vweird.f32 %v1179
      %vm1186 = vmor %vm1184, %vm1185
      %v1187 = vsel %vm1186, %v1179, %v1183
      %v1188 = vand.u32 2147483647, %v1175
      %vm1189 = vcmp.eq.f32.partialorder %v1188, 8.507059e+37
      %v1190 = vand.u32 %v1175, 2147483648
      %v1191 = vor.u32 1.1754944e-38, %v1190
      %v1192 = vsel %vm1189, %v1191, %v1187
      %v1193 = vmul.f32 1.0, %v1192
      %v1194 = vrcp.pop %v1176
      %v1195 = vmul.f32 %v1176, %v1194
      %v1196 = vsub.f32 1.0, %v1195
      %v1197 = vmul.f32 %v1194, %v1196
      %v1198 = vadd.f32 %v1194, %v1197
      %vm1199 = vweird.f32 %v1176
      %vm1200 = vweird.f32 %v1194
      %vm1201 = vmor %vm1199, %vm1200
      %v1202 = vsel %vm1201, %v1194, %v1198
      %v1203 = vand.u32 2147483647, %v1176
      %vm1204 = vcmp.eq.f32.partialorder %v1203, 8.507059e+37
      %v1205 = vand.u32 %v1176, 2147483648
      %v1206 = vor.u32 1.1754944e-38, %v1205
      %v1207 = vsel %vm1204, %v1206, %v1202
      %v1208 = vmul.f32 1.0, %v1207
      %v1209 = vrcp.pop %v1177
      %v1210 = vmul.f32 %v1177, %v1209
      %v1211 = vsub.f32 1.0, %v1210
      %v1212 = vmul.f32 %v1209, %v1211
      %v1213 = vadd.f32 %v1209, %v1212
      %vm1214 = vweird.f32 %v1177
      %vm1215 = vweird.f32 %v1209
      %vm1216 = vmor %vm1214, %vm1215
      %v1217 = vsel %vm1216, %v1209, %v1213
      %v1218 = vand.u32 2147483647, %v1177
      %vm1219 = vcmp.eq.f32.partialorder %v1218, 8.507059e+37
      %v1220 = vand.u32 %v1177, 2147483648
      %v1221 = vor.u32 1.1754944e-38, %v1220
      %v1222 = vsel %vm1219, %v1221, %v1217
      %v1223 = vmul.f32 1.0, %v1222
      %v1224 = vrcp.pop %v1178
      %v1225 = vmul.f32 %v1178, %v1224
      %v1226 = vsub.f32 1.0, %v1225
      %v1227 = vmul.f32 %v1224, %v1226
      %v1228 = vadd.f32 %v1224, %v1227
      %vm1229 = vweird.f32 %v1178
      %vm1230 = vweird.f32 %v1224
      %vm1231 = vmor %vm1229, %vm1230
      %v1232 = vsel %vm1231, %v1224, %v1228
      %v1233 = vand.u32 2147483647, %v1178
      %vm1234 = vcmp.eq.f32.partialorder %v1233, 8.507059e+37
      %v1235 = vand.u32 %v1178, 2147483648
      %v1236 = vor.u32 1.1754944e-38, %v1235
      %v1237 = vsel %vm1234, %v1236, %v1232
      %v1238 = vmul.f32 1.0, %v1237
      %v1239 = vmax.f32 %v1155, 0.0
      %v1240 = vmax.f32 %v1157, 0.0
      %v1241 = vmul.f32 %v1159, %v1193
      %v1242 = vmul.f32 %v1160, %v1208
      %v1243 = vmul.f32 %v1161, %v1223
      %v1244 = vmul.f32 %v1162, %v1238
      %v1245 = vld [vmem:[%s5] sm:$0x3]
      %v1247 = vperm.slane %v1245, 0
      %v1248 = vperm.slane %v1245, 1
      %v1251 = vmul.f32 %v1241, %v1247
      %v1252 = vmul.f32 %v1242, %v1248
      %v1253 = vmul.f32 %v1243, %v1247
      %v1254 = vmul.f32 %v1244, %v1248
      %v1255 = vadd.f32 %v1251, %v1252
      %1256 = vadd.xlane.f32.xlu0 %v1255
      %v1257 = vpop.xlane.xlu0 %1256
      %v1258 = vadd.f32 %v1253, %v1254
      %1259 = vadd.xlane.f32.xlu0 %v1258
      %v1260 = vpop.xlane.xlu0 %1259
      %v1261 = vld [vmem:[#allocation3] sm:$0x1]
      %v1263 = vperm.slane %v1261, 0
      %v1265 = vadd.f32 %v1257, %v1263
      %v1266 = vadd.f32 %v1260, %v1263
      %vm1267 = vcmask 7168
      %v1268 = vsel %vm1267, %v1265, -inf
      %v1269 = vrot.slane %v1268, 4
      %v1270 = vmax.f32 %v1268, %v1269
      %v1271 = vrot.slane %v1270, 2
      %v1272 = vmax.f32 %v1270, %v1271
      %v1273 = vrot.slane %v1272, 1
      %v1274 = vmax.f32 %v1272, %v1273
      %v1275 = vsel %vm1267, %v1266, -inf
      %v1276 = vrot.slane %v1275, 4
      %v1277 = vmax.f32 %v1275, %v1276
      %v1278 = vrot.slane %v1277, 2
      %v1279 = vmax.f32 %v1277, %v1278
      %v1280 = vrot.slane %v1279, 1
      %v1281 = vmax.f32 %v1279, %v1280
      %v1282 = vsub.f32 %v1265, %v1274
      %v1283 = vsub.f32 %v1266, %v1281
      %v1284 = vmul.f32 %v1282, 1.442695
      %v1285 = vpow.pop %v1284
      %v1286 = vmul.f32 %v1283, 1.442695
      %v1287 = vpow.pop %v1286
      %v1288 = vsel %vm1267, %v1285, 0.0
      %v1289 = vrot.slane %v1288, 4
      %v1290 = vadd.f32 %v1288, %v1289
      %v1291 = vrot.slane %v1290, 2
      %v1292 = vadd.f32 %v1290, %v1291
      %v1293 = vrot.slane %v1292, 1
      %v1294 = vadd.f32 %v1292, %v1293
      %v1295 = vsel %vm1267, %v1287, 0.0
      %v1296 = vrot.slane %v1295, 4
      %v1297 = vadd.f32 %v1295, %v1296
      %v1298 = vrot.slane %v1297, 2
      %v1299 = vadd.f32 %v1297, %v1298
      %v1300 = vrot.slane %v1299, 1
      %v1301 = vadd.f32 %v1299, %v1300
      %v1302 = vrcp.pop %v1294
      %v1303 = vrcp.pop %v1301
      %v1304 = vmul.f32 %v1285, %v1302
      %v1305 = vmul.f32 %v1287, %v1303
      %1307 = vset.pattern.permute.xlu0 0
      %1308 = vperm.xlu0 %1307, %v1304
      %v1309 = vpop.permute.xlu0 %1308
      %1312 = vset.pattern.permute.xlu0 0
      %1313 = vperm.xlu0 %1312, %v1305
      %v1314 = vpop.permute.xlu0 %1313
      %v1316 = vmul.f32 %v1309, %v818
      %v1317 = vmul.f32 %v1314, %v819
      %v1318 = vrot.slane %v1316, 4
      %v1319 = vadd.f32 %v1316, %v1318
      %v1320 = vrot.slane %v1319, 2
      %v1321 = vadd.f32 %v1319, %v1320
      %v1322 = vrot.slane %v1321, 1
      %v1323 = vadd.f32 %v1321, %v1322
      %v1324 = vrot.slane %v1317, 4
      %v1325 = vadd.f32 %v1317, %v1324
      %v1326 = vrot.slane %v1325, 2
      %v1327 = vadd.f32 %v1325, %v1326
      %v1328 = vrot.slane %v1327, 1
      %v1329 = vadd.f32 %v1327, %v1328
      %v1330 = vld [vmem:[%s7] sm:$0x1]
      %v1332 = vperm.slane %v1330, 0
      %v1334 = vmul.f32 %v1323, %v1332
      %v1335 = vmul.f32 %v1329, %v1332
      %v1338 = vrot.slane %v1335, 7
      %vm1339 = vcmask 1041409
      %v1340 = vsel %vm1339, %v1338, %v1334
      %vm1342 = vcmask 1041408
      %v1343 = vsel %vm1342, %v1340, 0.0
      %1344 = vadd.xlane.f32.xlu0 %v1343
      %v1345 = vpop.xlane.xlu0 %1344
      %v1346 = vld [vmem:[#allocation4] sm:$0x1]
      %v1348 = vperm.slane %v1346, 0
      %v1350 = vadd.f32 %v1345, %v1348
      %v1351 = vlaneseq
      %v1352 = vand.u32 %v1351, 127
      %vm1353 = vcmp.lt.s32.totalorder %v1352, 1
      %v1354 = vxor.u32 %v1350, 2147483648
      %v1355 = vmul.f32 %v1354, 1.442695
      %v1356 = vpow.pop %v1355
      %v1357 = vadd.f32 %v1356, 1.0
      %v1358 = vrcp.pop %v1357
      %v1359 = vmul.f32 %v1357, %v1358
      %v1360 = vsub.f32 1.0, %v1359
      %v1361 = vmul.f32 %v1358, %v1360
      %v1362 = vadd.f32 %v1358, %v1361
      %vm1363 = vweird.f32 %v1357
      %vm1364 = vweird.f32 %v1358
      %vm1365 = vmor %vm1363, %vm1364
      %v1366 = vsel %vm1365, %v1358, %v1362
      %v1367 = vand.u32 2147483647, %v1357
      %vm1368 = vcmp.eq.f32.partialorder %v1367, 8.507059e+37
      %v1369 = vand.u32 %v1357, 2147483648
      %v1370 = vor.u32 1.1754944e-38, %v1369
      %v1371 = vsel %vm1368, %v1370, %v1366
      %v1372 = vmul.f32 1.0, %v1371
      %1374 = vset.pattern.permute.xlu0 0
      %1375 = vperm.xlu0 %1374, %v1372
      %v1376 = vpop.permute.xlu0 %1375
      %v1378 = vsel %vm1353, %v1376, 0.0
      %1379 = vst [vmem:[#allocation14] sm:$0x3] %v1378
      %vm1380 = vcmp.eq.s32.totalorder %v1352, 0
      %v1381 = vxor.u32 %v1265, 2147483648
      %v1382 = vxor.u32 %v1266, 2147483648
      %v1383 = vmul.f32 %v1381, 1.442695
      %v1384 = vpow.pop %v1383
      %v1385 = vmul.f32 %v1382, 1.442695
      %v1386 = vpow.pop %v1385
      %v1387 = vadd.f32 %v1384, 1.0
      %v1388 = vadd.f32 %v1386, 1.0
      %v1389 = vrcp.pop %v1387
      %v1390 = vmul.f32 %v1387, %v1389
      %v1391 = vsub.f32 1.0, %v1390
      %v1392 = vmul.f32 %v1389, %v1391
      %v1393 = vadd.f32 %v1389, %v1392
      %vm1394 = vweird.f32 %v1387
      %vm1395 = vweird.f32 %v1389
      %vm1396 = vmor %vm1394, %vm1395
      %v1397 = vsel %vm1396, %v1389, %v1393
      %v1398 = vand.u32 2147483647, %v1387
      %vm1399 = vcmp.eq.f32.partialorder %v1398, 8.507059e+37
      %v1400 = vand.u32 %v1387, 2147483648
      %v1401 = vor.u32 1.1754944e-38, %v1400
      %v1402 = vsel %vm1399, %v1401, %v1397
      %v1403 = vmul.f32 1.0, %v1402
      %v1404 = vrcp.pop %v1388
      %v1405 = vmul.f32 %v1388, %v1404
      %v1406 = vsub.f32 1.0, %v1405
      %v1407 = vmul.f32 %v1404, %v1406
      %v1408 = vadd.f32 %v1404, %v1407
      %vm1409 = vweird.f32 %v1388
      %vm1410 = vweird.f32 %v1404
      %vm1411 = vmor %vm1409, %vm1410
      %v1412 = vsel %vm1411, %v1404, %v1408
      %v1413 = vand.u32 2147483647, %v1388
      %vm1414 = vcmp.eq.f32.partialorder %v1413, 8.507059e+37
      %v1415 = vand.u32 %v1388, 2147483648
      %v1416 = vor.u32 1.1754944e-38, %v1415
      %v1417 = vsel %vm1414, %v1416, %v1412
      %v1418 = vmul.f32 1.0, %v1417
      %1420 = vset.pattern.permute.xlu0 0
      %1421 = vperm.xlu0 %1420, %v1403
      %v1422 = vpop.permute.xlu0 %1421
      %1425 = vset.pattern.permute.xlu0 0
      %1426 = vperm.xlu0 %1425, %v1418
      %v1427 = vpop.permute.xlu0 %1426
      %v1429 = vsel %vm1380, %v1422, 0.0
      %v1430 = vsel %vm1380, %v1427, 0.0
      %1431 = vst [vmem:[#allocation15] sm:$0xff] %v1429
      %1432 = vst [vmem:[#allocation15 + $0x8] sm:$0xff] %v1430
      %v1433 = vpack.c.bf16 %v1240, %v1239
      %v1434 = vld [vmem:[#allocation13] sm:$0xf]
      %v1435 = vld [vmem:[#allocation13 + $0x4] sm:$0xf]
      %v1436 = vld [vmem:[#allocation13 + $0x8] sm:$0xf]
      %v1437 = vld [vmem:[#allocation13 + $0xc] sm:$0xf]
      %v1438 = vld [vmem:[#allocation13 + $0x10] sm:$0xf]
      %v1439 = vld [vmem:[#allocation13 + $0x14] sm:$0xf]
      %v1440 = vld [vmem:[#allocation13 + $0x18] sm:$0xf]
      %v1441 = vld [vmem:[#allocation13 + $0x1c] sm:$0xf]
      %v1442 = vld [vmem:[#allocation13 + $0x20] sm:$0xf]
      %v1443 = vld [vmem:[#allocation13 + $0x24] sm:$0xf]
      %v1444 = vld [vmem:[#allocation13 + $0x28] sm:$0xf]
      %v1445 = vld [vmem:[#allocation13 + $0x2c] sm:$0xf]
      %v1446 = vld [vmem:[#allocation13 + $0x30] sm:$0xf]
      %v1447 = vld [vmem:[#allocation13 + $0x34] sm:$0xf]
      %v1448 = vld [vmem:[#allocation13 + $0x38] sm:$0xf]
      %v1449 = vld [vmem:[#allocation13 + $0x3c] sm:$0xf]
      %v1450 = vld [vmem:[%s10] sm:$0x1]
      %v1452 = vperm.slane %v1450, 0
      %v1470 = vunpack.c.l.b16 %v1434
      %v1471 = vunpack.c.l.b16 %v1435
      %v1472 = vunpack.c.l.b16 %v1436
      %v1473 = vunpack.c.l.b16 %v1437
      %v1474 = vunpack.c.l.b16 %v1438
      %v1475 = vunpack.c.l.b16 %v1439
      %v1476 = vunpack.c.l.b16 %v1440
      %v1477 = vunpack.c.l.b16 %v1441
      %v1478 = vunpack.c.l.b16 %v1442
      %v1479 = vunpack.c.l.b16 %v1443
      %v1480 = vunpack.c.l.b16 %v1444
      %v1481 = vunpack.c.l.b16 %v1445
      %v1482 = vunpack.c.l.b16 %v1446
      %v1483 = vunpack.c.l.b16 %v1447
      %v1484 = vunpack.c.l.b16 %v1448
      %v1485 = vunpack.c.l.b16 %v1449
      %v1486 = vpack.c.b16 %v1471, %v1470
      %v1487 = vpack.c.b16 %v1473, %v1472
      %v1488 = vpack.c.b16 %v1475, %v1474
      %v1489 = vpack.c.b16 %v1477, %v1476
      %v1490 = vpack.c.b16 %v1479, %v1478
      %v1491 = vpack.c.b16 %v1481, %v1480
      %v1492 = vpack.c.b16 %v1483, %v1482
      %v1493 = vpack.c.b16 %v1485, %v1484
      %1502 = vmatpush.bf16.msra.mxu0 %v1493
      %1503 = vmatpush.bf16.msra.mxu0 %v1492
      %1504 = vmatpush.bf16.msra.mxu0 %v1491
      %1505 = vmatpush.bf16.msra.mxu0 %v1490
      %1506 = vmatpush.bf16.msra.mxu0 %v1489
      %1507 = vmatpush.bf16.msra.mxu0 %v1488
      %1508 = vmatpush.bf16.msra.mxu0 %v1487
      %1509 = vmatpush.bf16.msra.mxu0 %v1486
      %1510 = vmatmul.bf16.gmra.mxu0 %v1433
      %v1511 = vpop.f32.mrf.mxu0
      %v1512 = vadd.f32 %v1452, %v1511
      %v1513 = vpop.f32.mrf.mxu0
      %v1514 = vadd.f32 %v1452, %v1513
      %1515 = vdwg.mxu0
      %v1516 = vmul.f32 %v1512, %v1512
      %v1517 = vmul.f32 %v1514, %v1514
      %1518 = vadd.xlane.f32.xlu0 %v1516
      %v1519 = vpop.xlane.xlu0 %1518
      %1520 = vadd.xlane.f32.xlu0 %v1517
      %v1521 = vpop.xlane.xlu0 %1520
      %v1522 = vmax.f32 %v1519, 1e-24
      %v1523 = vmax.f32 %v1521, 1e-24
      %v1524 = vrsqrt.pop %v1522
      %v1525 = vmul.f32 %v1524, %v1522
      %v1526 = vmul.f32 %v1525, %v1524
      %v1527 = vmul.f32 0.5, %v1526
      %v1528 = vsub.f32 1.5, %v1527
      %v1529 = vmul.f32 %v1524, %v1528
      %vm1530 = vweird.f32 %v1522
      %vm1531 = vweird.f32 %v1524
      %vm1532 = vmor %vm1530, %vm1531
      %v1533 = vsel %vm1532, %v1524, %v1529
      %v1534 = vrsqrt.pop %v1523
      %v1535 = vmul.f32 %v1534, %v1523
      %v1536 = vmul.f32 %v1535, %v1534
      %v1537 = vmul.f32 0.5, %v1536
      %v1538 = vsub.f32 1.5, %v1537
      %v1539 = vmul.f32 %v1534, %v1538
      %vm1540 = vweird.f32 %v1523
      %vm1541 = vweird.f32 %v1534
      %vm1542 = vmor %vm1540, %vm1541
      %v1543 = vsel %vm1542, %v1534, %v1539
      %v1544 = vmul.f32 %v1512, %v1533
      %v1545 = vmul.f32 %v1514, %v1543
      %1546 = vst [vmem:[#allocation17] sm:$0xff] %v1544
      %1547 = vst [vmem:[#allocation17 + $0x8] sm:$0xff] %v1545
    $region73: #{tpu_custom_call.1} parent=1 // pred_fallthru
      _
    // Predicated region
    $region74: #{tpu_custom_call.1} parent=1 // pred_check
      _
    $region75: #{tpu_custom_call.1} parent=1 // pred_check_branch
      %1549 = sbr.rel (0) target = $region77
    $region76: #{tpu_custom_call.1} parent=1 // pred_region
      %1551 = vsyncadd [#allocation7], 0
      %s1553 = sshll.u32 [#allocation14], 4
      %s1554 = int_to_ptr.vmem [resolvable:$true] %s1553
      %s1555 = sshll.u32 %s11, 4
      %s1556 = int_to_ptr.hbm [resolvable:$true] %s1555
      %1558 = dma.vmem_to_hbm [thread:$0]  %s1554, 32, %s1556, [#allocation7]
    $region77: #{tpu_custom_call.1} parent=1 // pred_fallthru
      _
    // Predicated region
    $region78: #{tpu_custom_call.1} parent=1 // pred_check
      _
    $region79: #{tpu_custom_call.1} parent=1 // pred_check_branch
      %1560 = sbr.rel (0) target = $region81
    $region80: #{tpu_custom_call.1} parent=1 // pred_region
      %1562 = vsyncadd [#allocation16], 0
      %s1563 = sshll.u32 [#allocation15], 4
      %s1564 = int_to_ptr.vmem [resolvable:$true] %s1563
      %s1565 = sshll.u32 %s12, 4
      %s1566 = int_to_ptr.hbm [resolvable:$true] %s1565
      %1571 = dma.vmem_to_hbm [thread:$0]  %s1564, 256, %s1566, [#allocation16], 128, 128, 8
    $region81: #{tpu_custom_call.1} parent=1 // pred_fallthru
      _
    // Predicated region
    $region82: #{tpu_custom_call.1} parent=1 // pred_check
      _
    $region83: #{tpu_custom_call.1} parent=1 // pred_check_branch
      %1573 = sbr.rel (0) target = $region85
    $region84: #{tpu_custom_call.1} parent=1 // pred_region
      %1575 = vsyncadd [#allocation16], 0
      %s1576 = sshll.u32 [#allocation17], 4
      %s1577 = int_to_ptr.vmem [resolvable:$true] %s1576
      %s1578 = sshll.u32 %s13, 4
      %s1579 = int_to_ptr.hbm [resolvable:$true] %s1578
      %1584 = dma.vmem_to_hbm [thread:$0]  %s1577, 256, %s1579, [#allocation16], 128, 128, 8
    $region85: #{tpu_custom_call.1} parent=1 // pred_fallthru
      _
    // Predicated region
    $region86: #{tpu_custom_call.1} parent=1 // pred_check
      _
    $region87: #{tpu_custom_call.1} parent=1 // pred_check_branch
      %1586 = sbr.rel (0) target = $region89
    $region88: #{tpu_custom_call.1} parent=1 // pred_region
      %1588 = dma.done [#allocation7], 32
    $region89: #{tpu_custom_call.1} parent=1 // pred_fallthru
      _
    // Predicated region
    $region90: #{tpu_custom_call.1} parent=1 // pred_check
      _
    $region91: #{tpu_custom_call.1} parent=1 // pred_check_branch
      %1590 = sbr.rel (0) target = $region93
    $region92: #{tpu_custom_call.1} parent=1 // pred_region
      %1592 = dma.done [#allocation16], 256
    $region93: #{tpu_custom_call.1} parent=1 // pred_fallthru
      _
    // Predicated region
    $region94: #{tpu_custom_call.1} parent=1 // pred_check
      _
    $region95: #{tpu_custom_call.1} parent=1 // pred_check_branch
      %1594 = sbr.rel (0) target = $region97
    $region96: #{tpu_custom_call.1} parent=1 // pred_region
      %1596 = dma.done [#allocation16], 256
    $region97: #{tpu_custom_call.1} parent=1 // pred_fallthru
      _
    %1597 = vsyncpa [#allocation6], 1
    %1598 = vsyncpa [#allocation9], 1
    %1599 = vsyncpa [#allocation12], 1
    %1600 = vsyncpa [#allocation7], 1
    %1601 = vsyncpa [#allocation16], 1

</llo_original>
